<compile_context>
chip_gen: v5e
topology: v5e:2x2
jax: 0.10.0
libtpu: 0.0.40
codegen_flags: <defaults>
</compile_context>

<pallas_src>
import functools

import jax
import jax.numpy as jnp
from jax.experimental import pallas as pl
from jax.experimental.pallas import tpu as pltpu


# Padded-x row/col offset used by original tap kh (or kw) for output phase rp
# (or rq) of the fused upsample+conv:  y[2i+rp, 2j+rq] only ever touches
# x[i-1 .. i+1], and each phase touches at most a 2x2 neighbourhood.
_TAP_OFF = ((0, 1, 1), (1, 1, 2))


def _combine_phase_weights(w_hwio):
    """Fold 3x3 conv taps + nearest-x2 upsample into a (9*Cin, 4*Cout) matrix.

    Row block (r*3 + c) multiplies padded-input pixel x_pad[i + r, j + c];
    column block (2*rp + rq) is output phase (rp, rq)."""
    Cin, Cout = w_hwio.shape[2], w_hwio.shape[3]
    wb = jnp.zeros((3, 3, Cin, 2, 2, Cout), jnp.float32)
    for rp in range(2):
        for rq in range(2):
            for kh in range(3):
                for kw in range(3):
                    r, c = _TAP_OFF[rp][kh], _TAP_OFF[rq][kw]
                    wb = wb.at[r, c, :, rp, rq, :].add(w_hwio[kh, kw])
    return wb.reshape(9 * Cin, 4 * Cout)


def _pick_row_tile(H, W, Cin, Cout, budget_bytes=12 * 1024 * 1024):
    """Largest row tile whose (double-buffered) working set fits the budget."""
    for th in range(H, 0, -1):
        if th != H and (H % th or (th * W) % 8):
            continue
        in_t = (th + 2) * (W + 2) * Cin * 2       # bf16 input tile
        patch = th * W * 9 * Cin * 2              # bf16 im2col slab
        acc = th * W * 4 * Cout * 4               # f32 matmul result
        y_t = th * W * 4 * Cout * 2               # bf16 output tile
        if 2 * (in_t + y_t) + patch + acc <= budget_bytes:
            return th
    return H


def _conv_phase_kernel(xt_ref, w_ref, y_ref, s_ref, ss_ref, *, TH, W, Cin):
    """Fused upsample+conv for one (image, row-tile): one K=9*Cin matmul that
    produces all 4 sub-pixel phases, plus per-image BN partial sums."""
    t = pl.program_id(1)

    x = xt_ref[0]                                              # (TH+2, W+2, Cin) bf16
    # column taps c = 0,1,2 packed on the lane axis ...
    xc = jnp.concatenate(
        [x[:, 0:W, :], x[:, 1:W + 1, :], x[:, 2:W + 2, :]], axis=2)   # (TH+2, W, 3*Cin)
    # ... then row taps r = 0,1,2  ->  im2col slab with K = 9*Cin
    patch = jnp.concatenate([xc[0:TH], xc[1:TH + 1], xc[2:TH + 2]], axis=2)
    patch = patch.reshape(TH * W, 9 * Cin)                     # (TH*W, 9*Cin) bf16

    # One MXU matmul: every output pixel of every phase of this tile.
    acc = jnp.dot(patch, w_ref[...], preferred_element_type=jnp.float32)  # (TH*W, 4*Cout) f32

    # bf16 intermediate (BN/ReLU pass is HBM-bound); stats taken from f32 acc.
    y_ref[0] = acc.astype(y_ref.dtype)

    # Per-image partial BN statistics, accumulated over row tiles only (the
    # batch axis stays "parallel": each image owns its own stats row).
    @pl.when(t == 0)
    def _():
        s_ref[...] = jnp.zeros_like(s_ref)
        ss_ref[...] = jnp.zeros_like(ss_ref)

    s_ref[0] = s_ref[0] + jnp.sum(acc, axis=0, keepdims=True)
    ss_ref[0] = ss_ref[0] + jnp.sum(acc * acc, axis=0, keepdims=True)


def _bn_relu_kernel(y_ref, scale_ref, shift_ref, o_ref):
    """Elementwise BatchNorm affine (precomputed scale/shift) + ReLU."""
    y = y_ref[0].astype(jnp.float32)                           # (TH*W, 4*Cout)
    o_ref[0] = jnp.maximum(y * scale_ref[0, 0] + shift_ref[0, 0], 0.0)


def up_conv_forward(x_nchw, w_hwio, bias, gamma, beta, eps=1e-5):
    N, Cin, H, W = x_nchw.shape
    Cout = w_hwio.shape[-1]
    C4 = 4 * Cout

    # --- tiny glue on the ORIGINAL-resolution x (NCHW -> NHWC, pad 1, bf16) ---
    xp = jnp.pad(jnp.transpose(x_nchw, (0, 2, 3, 1)).astype(jnp.bfloat16),
                 ((0, 0), (1, 1), (1, 1), (0, 0)))             # (N, H+2, W+2, Cin)

    TH = _pick_row_tile(H, W, Cin, Cout)
    nT = H // TH
    # Materialise the 2-row halo per tile (negligible: original resolution).
    xt = jnp.stack([xp[:, t * TH:t * TH + TH + 2] for t in range(nT)], axis=1)
    xt = xt.reshape(N * nT, TH + 2, W + 2, Cin)

    wp = _combine_phase_weights(w_hwio.astype(jnp.float32)).astype(jnp.bfloat16)
    # Conv bias intentionally dropped: training-mode BN's mean subtraction
    # cancels a per-channel bias exactly, and variance is shift-invariant.
    del bias

    vmem_cap = 32 * 1024 * 1024
    conv = functools.partial(_conv_phase_kernel, TH=TH, W=W, Cin=Cin)
    y, s, ss = pl.pallas_call(
        conv,
        grid=(N, nT),
        in_specs=[
            pl.BlockSpec((1, TH + 2, W + 2, Cin), lambda n, t: (n * nT + t, 0, 0, 0)),
            pl.BlockSpec((9 * Cin, C4), lambda n, t: (0, 0)),
        ],
        out_specs=(
            pl.BlockSpec((1, TH * W, C4), lambda n, t: (n, t, 0)),
            pl.BlockSpec((1, 1, C4), lambda n, t: (n, 0, 0)),
            pl.BlockSpec((1, 1, C4), lambda n, t: (n, 0, 0)),
        ),
        out_shape=(
            jax.ShapeDtypeStruct((N, H * W, C4), jnp.bfloat16),   # phase-packed y
            jax.ShapeDtypeStruct((N, 1, C4), jnp.float32),        # per-image sum
            jax.ShapeDtypeStruct((N, 1, C4), jnp.float32),        # per-image sumsq
        ),
        compiler_params=pltpu.CompilerParams(
            dimension_semantics=("parallel", "arbitrary"),
            vmem_limit_bytes=vmem_cap),
    )(xt, wp)

    # --- BatchNorm batch statistics (training mode, biased variance) ---------
    cnt = float(N * 4 * H * W)                      # N * (2H) * (2W) per channel
    stot = jnp.sum(s.reshape(N, 4, Cout), axis=(0, 1))
    sstot = jnp.sum(ss.reshape(N, 4, Cout), axis=(0, 1))
    mean = stot / cnt
    # NOTE: E[y^2]-E[y]^2 in f32 (clamped >= 0); fine at these scales — switch
    # to a Welford/centered accumulation for very large N*H*W.
    var = jnp.maximum(sstot / cnt - mean * mean, 0.0)
    scale = gamma.astype(jnp.float32) * jax.lax.rsqrt(var + eps)
    shift = beta.astype(jnp.float32) - mean * scale
    scale4 = jnp.tile(scale, 4).reshape(1, 1, C4)   # replicate per phase
    shift4 = jnp.tile(shift, 4).reshape(1, 1, C4)

    out_ph = pl.pallas_call(
        _bn_relu_kernel,
        grid=(N, nT),
        in_specs=[
            pl.BlockSpec((1, TH * W, C4), lambda n, t: (n, t, 0)),
            pl.BlockSpec((1, 1, C4), lambda n, t: (0, 0, 0)),
            pl.BlockSpec((1, 1, C4), lambda n, t: (0, 0, 0)),
        ],
        out_specs=pl.BlockSpec((1, TH * W, C4), lambda n, t: (n, t, 0)),
        out_shape=jax.ShapeDtypeStruct((N, H * W, C4), jnp.float32),
        compiler_params=pltpu.CompilerParams(
            dimension_semantics=("parallel", "parallel"),
            vmem_limit_bytes=vmem_cap),
    )(y, scale4, shift4)

    # Single fused XLA pass: sub-pixel phase interleave + NHWC -> NCHW.
    # TODO(synk): emit NCHW directly from the BN kernel (in-VMEM transpose) to
    # drop this last full-tensor copy.
    out = out_ph.reshape(N, H, W, 2, 2, Cout)
    out = jnp.transpose(out, (0, 5, 1, 3, 2, 4)).reshape(N, Cout, 2 * H, 2 * W)
    return out


def up_conv_reference(x_nchw, w_hwio, bias, gamma, beta, eps=1e-5):
    """Faithful f32 reference of the PyTorch module (training-mode BN)."""
    x = jnp.transpose(x_nchw, (0, 2, 3, 1)).astype(jnp.float32)
    xu = jnp.repeat(jnp.repeat(x, 2, axis=1), 2, axis=2)
    y = jax.lax.conv_general_dilated(
        xu, w_hwio.astype(jnp.float32), (1, 1), "SAME",
        dimension_numbers=("NHWC", "HWIO", "NHWC")) + bias
    mean = y.mean(axis=(0, 1, 2))
    var = y.var(axis=(0, 1, 2))
    yn = (y - mean) / jnp.sqrt(var + eps) * gamma + beta
    return jnp.transpose(jnp.maximum(yn, 0.0), (0, 3, 1, 2))


if __name__ == "__main__":
    N, Cin, H, W = 2, 4, 16, 16
    Cout = 8

    key = jax.random.PRNGKey(0)
    kx, kw, kb = jax.random.split(key, 3)
    x = jax.random.normal(kx, (N, Cin, H, W), jnp.float32)
    # Conv2d params (torch weight (Cout,Cin,3,3) <-> our HWIO (3,3,Cin,Cout))
    w = jax.random.normal(kw, (3, 3, Cin, Cout), jnp.float32) * 0.1
    b = jax.random.normal(kb, (Cout,), jnp.float32) * 0.1
    # BatchNorm2d default init: gamma=1, beta=0 (training-mode batch stats)
    gamma = jnp.ones((Cout,), jnp.float32)
    beta = jnp.zeros((Cout,), jnp.float32)

    out = jax.block_until_ready(jax.jit(up_conv_forward)(x, w, b, gamma, beta))
    ref = up_conv_reference(x, w, b, gamma, beta)

    assert out.shape == (N, Cout, 2 * H, 2 * W)
    # bf16 MXU inputs + bf16 conv intermediate (per perf review, v6e/v7x) ->
    # compare against the pure-f32 reference at bf16-level tolerance.
    err = float(jnp.max(jnp.abs(out - ref)))
    assert jnp.allclose(out, ref, rtol=2e-2, atol=2e-2), f"max abs err {err}"

    print("KERNEL_OK")
</pallas_src>

<mosaic_0001>
module attributes {stable_mosaic.version = 11 : i64} {
  func.func @_conv_phase_kernel(%arg0: i32, %arg1: i32, %arg2: memref<1x18x18x4xbf16, #tpu.memory_space<vmem>>, %arg3: memref<36x32xbf16, #tpu.memory_space<vmem>>, %arg4: memref<1x256x32xbf16, #tpu.memory_space<vmem>>, %arg5: memref<1x1x32xf32, #tpu.memory_space<vmem>>, %arg6: memref<1x1x32xf32, #tpu.memory_space<vmem>>) attributes {dimension_semantics = [#tpu.dimension_semantics<parallel>, #tpu.dimension_semantics<arbitrary>], iteration_bounds = array<i64: 2, 1>, scalar_prefetch = 0 : i64, scratch_operands = 0 : i64, tpu.core_type = #tpu.core_type<tc>, window_params = [{transform_indices = @transform_0, window_bounds = array<i64: 1, 18, 18, 4>}, {pipeline_mode = #tpu.pipeline_mode<synchronous>, transform_indices = @transform_1, window_bounds = array<i64: 36, 32>}, {transform_indices = @transform_2, window_bounds = array<i64: 1, 256, 32>}, {transform_indices = @transform_3, window_bounds = array<i64: 1, 1, 32>}, {transform_indices = @transform_4, window_bounds = array<i64: 1, 1, 32>}]} {
    %c0 = arith.constant 0 : index
    %c0_0 = arith.constant 0 : index
    %c0_1 = arith.constant 0 : index
    %c0_2 = arith.constant 0 : index
    %0 = vector.load %arg2[%c0, %c0_0, %c0_1, %c0_2] : memref<1x18x18x4xbf16, #tpu.memory_space<vmem>>, vector<1x18x18x4xbf16>
    %1 = vector.shape_cast %0 : vector<1x18x18x4xbf16> to vector<18x18x4xbf16>
    %2 = vector.extract_strided_slice %1 {offsets = [0, 0, 0], sizes = [18, 16, 4], strides = [1, 1, 1]} : vector<18x18x4xbf16> to vector<18x16x4xbf16>
    %3 = vector.extract_strided_slice %1 {offsets = [0, 1, 0], sizes = [18, 16, 4], strides = [1, 1, 1]} : vector<18x18x4xbf16> to vector<18x16x4xbf16>
    %4 = vector.extract_strided_slice %1 {offsets = [0, 2, 0], sizes = [18, 16, 4], strides = [1, 1, 1]} : vector<18x18x4xbf16> to vector<18x16x4xbf16>
    %5 = tpu.concatenate %2, %3, %4 in 2 : vector<18x16x4xbf16>, vector<18x16x4xbf16>, vector<18x16x4xbf16> -> vector<18x16x12xbf16>
    %6 = vector.extract_strided_slice %5 {offsets = [0, 0, 0], sizes = [16, 16, 12], strides = [1, 1, 1]} : vector<18x16x12xbf16> to vector<16x16x12xbf16>
    %7 = vector.extract_strided_slice %5 {offsets = [1, 0, 0], sizes = [16, 16, 12], strides = [1, 1, 1]} : vector<18x16x12xbf16> to vector<16x16x12xbf16>
    %8 = vector.extract_strided_slice %5 {offsets = [2, 0, 0], sizes = [16, 16, 12], strides = [1, 1, 1]} : vector<18x16x12xbf16> to vector<16x16x12xbf16>
    %9 = tpu.concatenate %6, %7, %8 in 2 : vector<16x16x12xbf16>, vector<16x16x12xbf16>, vector<16x16x12xbf16> -> vector<16x16x36xbf16>
    %10 = vector.shape_cast %9 : vector<16x16x36xbf16> to vector<256x36xbf16>
    %c0_3 = arith.constant 0 : index
    %c0_4 = arith.constant 0 : index
    %11 = vector.load %arg3[%c0_3, %c0_4] : memref<36x32xbf16, #tpu.memory_space<vmem>>, vector<36x32xbf16>
    %cst = arith.constant dense<0.000000e+00> : vector<256x32xf32>
    %12 = tpu.matmul %10, %11, %cst {dimension_numbers = #tpu.dot_dimension_numbers<[1], [0], [0], [1], [0, 0, 1, 1], [], []>} : vector<256x36xbf16>, vector<36x32xbf16>, vector<256x32xf32> -> vector<256x32xf32>
    %13 = arith.truncf %12 : vector<256x32xf32> to vector<256x32xbf16>
    %c0_5 = arith.constant 0 : index
    %c0_6 = arith.constant 0 : index
    %c0_7 = arith.constant 0 : index
    %14 = vector.load %arg4[%c0_5, %c0_6, %c0_7] : memref<1x256x32xbf16, #tpu.memory_space<vmem>>, vector<1x256x32xbf16>
    %15 = vector.shape_cast %14 : vector<1x256x32xbf16> to vector<256x32xbf16>
    %16 = vector.shape_cast %13 : vector<256x32xbf16> to vector<1x256x32xbf16>
    tpu.vector_store %arg4[%c0_5, %c0_6, %c0_7], %16 {strides = array<i32>} : memref<1x256x32xbf16, #tpu.memory_space<vmem>>, vector<1x256x32xbf16>,
    %c0_i32 = arith.constant 0 : i32
    %17 = arith.cmpi eq, %arg1, %c0_i32 : i32
    %18 = arith.extui %17 : i1 to i32
    %c0_i32_8 = arith.constant 0 : i32
    %19 = arith.cmpi ne, %18, %c0_i32_8 : i32
    scf.if %19 {
      %cst_23 = arith.constant 0.000000e+00 : f32
      %37 = vector.broadcast %cst_23 : f32 to vector<1x1x32xf32>
      %c0_24 = arith.constant 0 : index
      %c0_25 = arith.constant 0 : index
      %c0_26 = arith.constant 0 : index
      %38 = vector.load %arg5[%c0_24, %c0_25, %c0_26] : memref<1x1x32xf32, #tpu.memory_space<vmem>>, vector<1x1x32xf32>
      tpu.vector_store %arg5[%c0_24, %c0_25, %c0_26], %37 {strides = array<i32>} : memref<1x1x32xf32, #tpu.memory_space<vmem>>, vector<1x1x32xf32>,
      %cst_27 = arith.constant 0.000000e+00 : f32
      %39 = vector.broadcast %cst_27 : f32 to vector<1x1x32xf32>
      %c0_28 = arith.constant 0 : index
      %c0_29 = arith.constant 0 : index
      %c0_30 = arith.constant 0 : index
      %40 = vector.load %arg6[%c0_28, %c0_29, %c0_30] : memref<1x1x32xf32, #tpu.memory_space<vmem>>, vector<1x1x32xf32>
      tpu.vector_store %arg6[%c0_28, %c0_29, %c0_30], %39 {strides = array<i32>} : memref<1x1x32xf32, #tpu.memory_space<vmem>>, vector<1x1x32xf32>,
    } else {
    }
    %c0_9 = arith.constant 0 : index
    %c0_10 = arith.constant 0 : index
    %c0_11 = arith.constant 0 : index
    %20 = vector.load %arg5[%c0_9, %c0_10, %c0_11] : memref<1x1x32xf32, #tpu.memory_space<vmem>>, vector<1x1x32xf32>
    %21 = vector.shape_cast %20 : vector<1x1x32xf32> to vector<1x32xf32>
    %cst_12 = arith.constant dense<0.000000e+00> : vector<32xf32>
    %22 = vector.multi_reduction <add>, %12, %cst_12 [0] : vector<256x32xf32> to vector<32xf32>
    %23 = vector.shape_cast %22 : vector<32xf32> to vector<1x32xf32>
    %24 = arith.addf %21, %23 : vector<1x32xf32>
    %c0_13 = arith.constant 0 : index
    %c0_14 = arith.constant 0 : index
    %c0_15 = arith.constant 0 : index
    %25 = vector.load %arg5[%c0_13, %c0_14, %c0_15] : memref<1x1x32xf32, #tpu.memory_space<vmem>>, vector<1x1x32xf32>
    %26 = vector.shape_cast %25 : vector<1x1x32xf32> to vector<1x32xf32>
    %27 = vector.shape_cast %24 : vector<1x32xf32> to vector<1x1x32xf32>
    tpu.vector_store %arg5[%c0_13, %c0_14, %c0_15], %27 {strides = array<i32>} : memref<1x1x32xf32, #tpu.memory_space<vmem>>, vector<1x1x32xf32>,
    %c0_16 = arith.constant 0 : index
    %c0_17 = arith.constant 0 : index
    %c0_18 = arith.constant 0 : index
    %28 = vector.load %arg6[%c0_16, %c0_17, %c0_18] : memref<1x1x32xf32, #tpu.memory_space<vmem>>, vector<1x1x32xf32>
    %29 = vector.shape_cast %28 : vector<1x1x32xf32> to vector<1x32xf32>
    %30 = arith.mulf %12, %12 : vector<256x32xf32>
    %cst_19 = arith.constant dense<0.000000e+00> : vector<32xf32>
    %31 = vector.multi_reduction <add>, %30, %cst_19 [0] : vector<256x32xf32> to vector<32xf32>
    %32 = vector.shape_cast %31 : vector<32xf32> to vector<1x32xf32>
    %33 = arith.addf %29, %32 : vector<1x32xf32>
    %c0_20 = arith.constant 0 : index
    %c0_21 = arith.constant 0 : index
    %c0_22 = arith.constant 0 : index
    %34 = vector.load %arg6[%c0_20, %c0_21, %c0_22] : memref<1x1x32xf32, #tpu.memory_space<vmem>>, vector<1x1x32xf32>
    %35 = vector.shape_cast %34 : vector<1x1x32xf32> to vector<1x32xf32>
    %36 = vector.shape_cast %33 : vector<1x32xf32> to vector<1x1x32xf32>
    tpu.vector_store %arg6[%c0_20, %c0_21, %c0_22], %36 {strides = array<i32>} : memref<1x1x32xf32, #tpu.memory_space<vmem>>, vector<1x1x32xf32>,
    return
  }
  func.func @transform_0(%arg0: i32, %arg1: i32) -> (i32, i32, i32, i32) {
    %c1_i32 = arith.constant 1 : i32
    %0 = arith.muli %arg0, %c1_i32 : i32
    %1 = arith.addi %0, %arg1 : i32
    %c0_i32 = arith.constant 0 : i32
    %c0_i32_0 = arith.constant 0 : i32
    %c0_i32_1 = arith.constant 0 : i32
    %c0_i32_2 = arith.constant 0 : i32
    return %1, %c0_i32, %c0_i32_0, %c0_i32_1 : i32, i32, i32, i32
  }
  func.func @transform_1(%arg0: i32, %arg1: i32) -> (i32, i32) {
    %c0_i32 = arith.constant 0 : i32
    %c0_i32_0 = arith.constant 0 : i32
    %c0_i32_1 = arith.constant 0 : i32
    return %c0_i32, %c0_i32_0 : i32, i32
  }
  func.func @transform_2(%arg0: i32, %arg1: i32) -> (i32, i32, i32) {
    %c0_i32 = arith.constant 0 : i32
    %c0_i32_0 = arith.constant 0 : i32
    return %arg0, %arg1, %c0_i32 : i32, i32, i32
  }
  func.func @transform_3(%arg0: i32, %arg1: i32) -> (i32, i32, i32) {
    %c0_i32 = arith.constant 0 : i32
    %c0_i32_0 = arith.constant 0 : i32
    %c0_i32_1 = arith.constant 0 : i32
    return %arg0, %c0_i32, %c0_i32_0 : i32, i32, i32
  }
  func.func @transform_4(%arg0: i32, %arg1: i32) -> (i32, i32, i32) {
    %c0_i32 = arith.constant 0 : i32
    %c0_i32_0 = arith.constant 0 : i32
    %c0_i32_1 = arith.constant 0 : i32
    return %arg0, %c0_i32, %c0_i32_0 : i32, i32, i32
  }
}

module attributes {stable_mosaic.version = 11 : i64} {
  func.func @_bn_relu_kernel(%arg0: i32, %arg1: i32, %arg2: memref<1x256x32xbf16, #tpu.memory_space<vmem>>, %arg3: memref<1x1x32xf32, #tpu.memory_space<vmem>>, %arg4: memref<1x1x32xf32, #tpu.memory_space<vmem>>, %arg5: memref<1x256x32xf32, #tpu.memory_space<vmem>>) attributes {dimension_semantics = [#tpu.dimension_semantics<parallel>, #tpu.dimension_semantics<parallel>], iteration_bounds = array<i64: 2, 1>, scalar_prefetch = 0 : i64, scratch_operands = 0 : i64, tpu.core_type = #tpu.core_type<tc>, window_params = [{transform_indices = @transform_0, window_bounds = array<i64: 1, 256, 32>}, {pipeline_mode = #tpu.pipeline_mode<synchronous>, transform_indices = @transform_1, window_bounds = array<i64: 1, 1, 32>}, {pipeline_mode = #tpu.pipeline_mode<synchronous>, transform_indices = @transform_2, window_bounds = array<i64: 1, 1, 32>}, {transform_indices = @transform_3, window_bounds = array<i64: 1, 256, 32>}]} {
    %c0 = arith.constant 0 : index
    %c0_0 = arith.constant 0 : index
    %c0_1 = arith.constant 0 : index
    %0 = vector.load %arg2[%c0, %c0_0, %c0_1] : memref<1x256x32xbf16, #tpu.memory_space<vmem>>, vector<1x256x32xbf16>
    %1 = vector.shape_cast %0 : vector<1x256x32xbf16> to vector<256x32xbf16>
    %2 = arith.extf %1 : vector<256x32xbf16> to vector<256x32xf32>
    %c0_2 = arith.constant 0 : index
    %c0_3 = arith.constant 0 : index
    %c0_4 = arith.constant 0 : index
    %3 = vector.load %arg3[%c0_2, %c0_3, %c0_4] : memref<1x1x32xf32, #tpu.memory_space<vmem>>, vector<1x1x32xf32>
    %4 = vector.shape_cast %3 : vector<1x1x32xf32> to vector<32xf32>
    %5 = vector.shape_cast %4 : vector<32xf32> to vector<1x32xf32>
    %6 = vector.broadcast %5 : vector<1x32xf32> to vector<256x32xf32>
    %7 = arith.mulf %2, %6 : vector<256x32xf32>
    %c0_5 = arith.constant 0 : index
    %c0_6 = arith.constant 0 : index
    %c0_7 = arith.constant 0 : index
    %8 = vector.load %arg4[%c0_5, %c0_6, %c0_7] : memref<1x1x32xf32, #tpu.memory_space<vmem>>, vector<1x1x32xf32>
    %9 = vector.shape_cast %8 : vector<1x1x32xf32> to vector<32xf32>
    %10 = vector.shape_cast %9 : vector<32xf32> to vector<1x32xf32>
    %11 = vector.broadcast %10 : vector<1x32xf32> to vector<256x32xf32>
    %12 = arith.addf %7, %11 : vector<256x32xf32>
    %cst = arith.constant 0.000000e+00 : f32
    %13 = vector.broadcast %cst : f32 to vector<256x32xf32>
    %14 = arith.maximumf %12, %13 : vector<256x32xf32>
    %c0_8 = arith.constant 0 : index
    %c0_9 = arith.constant 0 : index
    %c0_10 = arith.constant 0 : index
    %15 = vector.load %arg5[%c0_8, %c0_9, %c0_10] : memref<1x256x32xf32, #tpu.memory_space<vmem>>, vector<1x256x32xf32>
    %16 = vector.shape_cast %15 : vector<1x256x32xf32> to vector<256x32xf32>
    %17 = vector.shape_cast %14 : vector<256x32xf32> to vector<1x256x32xf32>
    tpu.vector_store %arg5[%c0_8, %c0_9, %c0_10], %17 {strides = array<i32>} : memref<1x256x32xf32, #tpu.memory_space<vmem>>, vector<1x256x32xf32>,
    return
  }
  func.func @transform_0(%arg0: i32, %arg1: i32) -> (i32, i32, i32) {
    %c0_i32 = arith.constant 0 : i32
    %c0_i32_0 = arith.constant 0 : i32
    return %arg0, %arg1, %c0_i32 : i32, i32, i32
  }
  func.func @transform_1(%arg0: i32, %arg1: i32) -> (i32, i32, i32) {
    %c0_i32 = arith.constant 0 : i32
    %c0_i32_0 = arith.constant 0 : i32
    %c0_i32_1 = arith.constant 0 : i32
    %c0_i32_2 = arith.constant 0 : i32
    return %c0_i32, %c0_i32_0, %c0_i32_1 : i32, i32, i32
  }
  func.func @transform_2(%arg0: i32, %arg1: i32) -> (i32, i32, i32) {
    %c0_i32 = arith.constant 0 : i32
    %c0_i32_0 = arith.constant 0 : i32
    %c0_i32_1 = arith.constant 0 : i32
    %c0_i32_2 = arith.constant 0 : i32
    return %c0_i32, %c0_i32_0, %c0_i32_1 : i32, i32, i32
  }
  func.func @transform_3(%arg0: i32, %arg1: i32) -> (i32, i32, i32) {
    %c0_i32 = arith.constant 0 : i32
    %c0_i32_0 = arith.constant 0 : i32
    return %arg0, %arg1, %c0_i32 : i32, i32, i32
  }
}

</mosaic_0001>

<llo_original>
// kernel: tile.18
$region0: #{tile.18}
  #allocation0 [shape = 's32[1]{0}', space=sflag, size = 0x4, scoped, tag = 'scoped memory for tile.18']
  %s0 = inlined_call_operand.vmem [shape: f32[8], index: 0, kind: input, shape index: {}]
  %s1 = inlined_call_operand.vmem [shape: f32[4,8], index: 1, kind: output, shape index: {}]
  // Predicated region
  $region2: #{tile.18} parent=0 // pred_check
    _
  $region3: #{tile.18} parent=0 // pred_check_branch
    %3 = sbr.rel (0) target = $region5
  $region4: #{tile.18} parent=0 // pred_region
    _
  $region5: #{tile.18} parent=0 // pred_fallthru
    _
  %v4 = vld [vmem:[%s0] ss:$0 sm:$0xff]
  %5 = vst [vmem:[%s1] sm:$0xf] %v4

// kernel: tile.19
$region0: #{tile.19}
  %s0 = inlined_call_operand.vmem [shape: f32[4,8], index: 0, kind: input, shape index: {}]
  %s1 = inlined_call_operand.vmem [shape: f32[1,1,32], index: 1, kind: output, shape index: {}]
  $region1: #{tile.19} parent=0
    #allocation0 [shape = 'u8[4096]{0}', space=vmem, size = 0x1000, scoped, tag = 'scoped mem for output reshape']
    #allocation1 [shape = 'u8[4096]{0}', space=vmem, size = 0x1000, scoped, tag = 'scoped mem for input reshape']
    %s3 = ssub.s32 16, 1
    %v4 = vld [vmem:[%s0] sm:%s3]
    %5 = vst [vmem:[#allocation1] sm:%s3] %v4
    %v6 = vld [vmem:[#allocation1] sm:$0x1]
    %vm7 = vcmask 64512
    %8 = vst.msk [vmem:[#allocation0] sm:$0x1] %vm7, %v6
    %s9 = scalar_lea.vmem [#allocation1], 3
    %v10 = vld [vmem:[%s9] sm:$0x1]
    %11 = vrot.lane.b32.xlu0 %v10, 24
    %v12 = vpop.permute.xlu0 %11
    %vm13 = vcmask 261312
    %14 = vst.msk [vmem:[#allocation0] sm:$0x1] %vm13, %v12
    %s15 = scalar_lea.vmem [#allocation1], 2
    %v16 = vld [vmem:[%s15] sm:$0x1]
    %17 = vrot.lane.b32.xlu0 %v16, 16
    %v18 = vpop.permute.xlu0 %17
    %vm19 = vcmask 195712
    %20 = vst.msk [vmem:[#allocation0] sm:$0x1] %vm19, %v18
    %s21 = scalar_lea.vmem [#allocation1], 1
    %v22 = vld [vmem:[%s21] sm:$0x1]
    %23 = vrot.lane.b32.xlu0 %v22, 8
    %v24 = vpop.permute.xlu0 %23
    %vm25 = vcmask 130112
    %26 = vst.msk [vmem:[#allocation0] sm:$0x1] %vm25, %v24
    %s28 = ssub.s32 2, 1
    %v29 = vld [vmem:[#allocation0] sm:%s28]
    %s31 = ssub.s32 2, 1
    %32 = vst [vmem:[%s1] sm:%s31] %v29

// kernel: up_conv_forward.3
$region0: #{up_conv_forward.3}
  #allocation0 [shape = 'u32[]', space=smem, size = 0x4, offset = 0x4, fixed_abs, tag = 'smem constant byte address 0x4 - core index']
  #allocation1 [shape = 'u32[72,128]{1,0:T(1,128)}', space=vmem, size = 0x9000, scoped, tag = 'internal scratch']
  %s0 = inlined_call_operand.vmem [shape: bf16[2,256,32], index: 0, kind: input, shape index: {}]
  %s1 = inlined_call_operand.vmem [shape: f32[1,1,32], index: 1, kind: input, shape index: {}]
  %s2 = inlined_call_operand.vmem [shape: f32[1,1,32], index: 2, kind: input, shape index: {}]
  %s3 = inlined_call_operand.vmem [shape: f32[2,256,32], index: 3, kind: output, shape index: {}]
  %s4 = sld [smem:[#allocation0]]
  $region45: #{up_conv_forward.3} parent=0
    _
  %s6 = ssub.s32 1, %s4
  %s7 = scalar_select 0, %s6, %s4
  loop: start=0, step=1, limit=4
  $region2: #{up_conv_forward.3} parent=0 // loop_pre_header
    _
  $region3: #{up_conv_forward.3} parent=0 // loop_header
    %s9 = sphi 0, %s13
    %p10 = scmp.ge.s32.totalorder %s9, 4
    %s16 = sphi 0, %s28
    %s17 = sphi 0, %s24
    %s18 = sphi 0, %s16
    %s19 = sphi 0, %s17
    %s20 = sphi 0, %s18
    %s21 = sphi 0, %s19
    %s33 = sphi 0, %s35
    %s36 = sphi 0, %s33
    %s37 = sphi 0, %s36
    %s53 = sphi 0, %s37
    %s57 = sphi 0, %s57
    %s59 = sphi 0, %s57
    %s60 = sphi 0, %s59
    %s74 = sphi 0, %s60
    %s78 = sphi 0, %s78
    %s80 = sphi 0, %s78
    %s81 = sphi 0, %s80
    %s95 = sphi 0, %s81
    %s103 = sphi 0, %s105
    %s106 = sphi 0, %s103
    %s107 = sphi 0, %s106
    %s123 = sphi 0, %s107
  $region4: #{up_conv_forward.3} parent=0 // loop_header_branch
    %12 = sbr.rel (%p10) target = $region8
  $region5: #{up_conv_forward.3} parent=0 // loop_body
    %s14 = ssub.s32 %s9, 1
    %s15 = ssub.s32 %s9, 2
    %s22 = sadd.s32 1, %s17
    %p23 = scmp.ge.s32.totalorder %s22, 1
    %s24 = scalar_select %p23, 0, %s22
    %s25 = sadd.s32 1, %s16
    %s26 = scalar_select %p23, %s25, %s16
    %p27 = scmp.ge.s32.totalorder %s26, 2
    %s28 = scalar_select %p27, 0, %s26
    %s29 = ssub.s32 %s16, %s28
    %s30 = ssub.s32 %s17, %s24
    %s31 = sor.u32 %s29, %s30
    %p32 = scmp.eq.s32.totalorder %s31, 0
    %s34 = sadd.s32 %s33, 1
    %s35 = scalar_select %p32, %s33, %s34
    %p38 = pneg %p32
    %p39 = scmp.eq.s32.totalorder %s9, 1
    %p40 = por %p38, %p39
    %p41 = scmp.ne.s32.totalorder %s33, %s36
    %p42 = scmp.eq.s32.totalorder %s9, 0
    %p43 = por %p41, %p42
    %p44 = scmp.ne.s32.totalorder %s33, %s36
    %p45 = scmp.eq.s32.totalorder %s14, 1
    %p46 = por %p44, %p45
    %p47 = scmp.ne.s32.totalorder %s36, %s37
    %p48 = scmp.eq.s32.totalorder %s14, 0
    %p49 = por %p47, %p48
    %p50 = scmp.ne.s32.totalorder %s36, %s37
    %p51 = scmp.eq.s32.totalorder %s15, 1
    %p52 = por %p50, %p51
    %p54 = scmp.ne.s32.totalorder %s37, %s53
    %p55 = scmp.eq.s32.totalorder %s15, 0
    %p56 = por %p54, %p55
    %s58 = sadd.s32 %s57, 1
    %p61 = scmp.eq.s32.totalorder %s9, 1
    %p62 = scmp.ne.s32.totalorder %s57, %s59
    %p63 = scmp.eq.s32.totalorder %s9, 0
    %p64 = por %p62, %p63
    %p65 = scmp.ne.s32.totalorder %s57, %s59
    %p66 = scmp.eq.s32.totalorder %s14, 1
    %p67 = por %p65, %p66
    %p68 = scmp.ne.s32.totalorder %s59, %s60
    %p69 = scmp.eq.s32.totalorder %s14, 0
    %p70 = por %p68, %p69
    %p71 = scmp.ne.s32.totalorder %s59, %s60
    %p72 = scmp.eq.s32.totalorder %s15, 1
    %p73 = por %p71, %p72
    %p75 = scmp.ne.s32.totalorder %s60, %s74
    %p76 = scmp.eq.s32.totalorder %s15, 0
    %p77 = por %p75, %p76
    %s79 = sadd.s32 %s78, 1
    %p82 = scmp.eq.s32.totalorder %s9, 1
    %p83 = scmp.ne.s32.totalorder %s78, %s80
    %p84 = scmp.eq.s32.totalorder %s9, 0
    %p85 = por %p83, %p84
    %p86 = scmp.ne.s32.totalorder %s78, %s80
    %p87 = scmp.eq.s32.totalorder %s14, 1
    %p88 = por %p86, %p87
    %p89 = scmp.ne.s32.totalorder %s80, %s81
    %p90 = scmp.eq.s32.totalorder %s14, 0
    %p91 = por %p89, %p90
    %p92 = scmp.ne.s32.totalorder %s80, %s81
    %p93 = scmp.eq.s32.totalorder %s15, 1
    %p94 = por %p92, %p93
    %p96 = scmp.ne.s32.totalorder %s81, %s95
    %p97 = scmp.eq.s32.totalorder %s15, 0
    %p98 = por %p96, %p97
    %s99 = ssub.s32 %s16, %s28
    %s100 = ssub.s32 %s17, %s24
    %s101 = sor.u32 %s99, %s100
    %p102 = scmp.eq.s32.totalorder %s101, 0
    %s104 = sadd.s32 %s103, 1
    %s105 = scalar_select %p102, %s103, %s104
    %p108 = pneg %p102
    %p109 = scmp.eq.s32.totalorder %s9, 1
    %p110 = por %p108, %p109
    %p111 = scmp.ne.s32.totalorder %s103, %s106
    %p112 = scmp.eq.s32.totalorder %s9, 0
    %p113 = por %p111, %p112
    %p114 = scmp.ne.s32.totalorder %s103, %s106
    %p115 = scmp.eq.s32.totalorder %s14, 1
    %p116 = por %p114, %p115
    %p117 = scmp.ne.s32.totalorder %s106, %s107
    %p118 = scmp.eq.s32.totalorder %s14, 0
    %p119 = por %p117, %p118
    %p120 = scmp.ne.s32.totalorder %s106, %s107
    %p121 = scmp.eq.s32.totalorder %s15, 1
    %p122 = por %p120, %p121
    %p124 = scmp.ne.s32.totalorder %s107, %s123
    %p125 = scmp.eq.s32.totalorder %s15, 0
    %p126 = por %p124, %p125
    %p127 = scmp.le.s32.totalorder 1, %s9
    %p128 = scmp.lt.s32.totalorder %s9, 3
    %p129 = pnand %p127, %p128
    %p130 = pneg %p129
    // Predicated region
    $region9: #{up_conv_forward.3} parent=5 // pred_check
      _
    $region10: #{up_conv_forward.3} parent=5 // pred_check_branch
      %132 = sbr.rel (%p129) target = $region12
    $region11: #{up_conv_forward.3} parent=5 // pred_region
      %s133 = ssub.s32 %s9, 1
      // Predicated region
      $region13: #{up_conv_forward.3} parent=11 // pred_check
        %p134 = pneg %p70
      $region14: #{up_conv_forward.3} parent=11 // pred_check_branch
        %136 = sbr.rel (%p134) target = $region16
      $region15: #{up_conv_forward.3} parent=11 // pred_region
        _
      $region16: #{up_conv_forward.3} parent=11 // pred_fallthru
        _
      // Predicated region
      $region17: #{up_conv_forward.3} parent=11 // pred_check
        %p137 = pneg %p91
      $region18: #{up_conv_forward.3} parent=11 // pred_check_branch
        %139 = sbr.rel (%p137) target = $region20
      $region19: #{up_conv_forward.3} parent=11 // pred_region
        _
      $region20: #{up_conv_forward.3} parent=11 // pred_fallthru
        _
    $region12: #{up_conv_forward.3} parent=5 // pred_fallthru
      _
    %p140 = scmp.lt.s32.totalorder %s9, 2
    // Predicated region
    $region21: #{up_conv_forward.3} parent=5 // pred_check
      %p141 = pneg %p140
    $region22: #{up_conv_forward.3} parent=5 // pred_check_branch
      %143 = sbr.rel (%p141) target = $region24
    $region23: #{up_conv_forward.3} parent=5 // pred_region
      // Predicated region
      $region25: #{up_conv_forward.3} parent=23 // pred_check
        %p144 = pneg %p43
      $region26: #{up_conv_forward.3} parent=23 // pred_check_branch
        %146 = sbr.rel (%p144) target = $region28
      $region27: #{up_conv_forward.3} parent=23 // pred_region
        %s147 = smul.u32 32, %s17
        %p148 = scmp.lt.s32.totalorder %s16, 1
        %s149 = scalar_select %p148, %s16, 1
        %p150 = scmp.lt.s32.totalorder %s147, 31
        %s151 = scalar_select %p150, %s147, 31
        %s152 = smul.addr %s149, 32
        %s153 = sadd.s32 %s151, %s152
        %s154 = smul.addr %s153, 4
        %s155 = scalar_lea.vmem %s0, %s154
        %s156 = smul.u32 32, %s17
      $region28: #{up_conv_forward.3} parent=23 // pred_fallthru
        _
    $region24: #{up_conv_forward.3} parent=5 // pred_fallthru
      _
    %p157 = scmp.le.s32.totalorder 1, %s9
    %p158 = scmp.lt.s32.totalorder %s9, 3
    %p159 = pnand %p157, %p158
    %p160 = pneg %p159
    // Predicated region
    $region29: #{up_conv_forward.3} parent=5 // pred_check
      _
    $region30: #{up_conv_forward.3} parent=5 // pred_check_branch
      %162 = sbr.rel (%p159) target = $region32
    $region31: #{up_conv_forward.3} parent=5 // pred_region
      %s163 = ssub.s32 %s9, 1
      %s164 = smul.u32 32, %s19
      %p165 = scmp.lt.s32.totalorder %s18, 1
      %s166 = scalar_select %p165, %s18, 1
      %p167 = scmp.lt.s32.totalorder %s164, 31
      %s168 = scalar_select %p167, %s164, 31
      %s169 = smul.addr %s166, 32
      %s170 = sadd.s32 %s168, %s169
      %s171 = smul.addr %s170, 4
      %s172 = scalar_lea.vmem %s0, %s171
      %p173 = pneg %p49
      %p174 = pneg %p46
      %p175 = pneg %p70
      %p176 = pneg %p67
      %p177 = pneg %p91
      %p178 = pneg %p88
      %p179 = pneg %p119
      %p180 = pneg %p116
      %s181 = smul.u32 32, %s19
      %p182 = scmp.lt.s32.totalorder %s18, 1
      %s183 = scalar_select %p182, %s18, 1
      %p184 = scmp.lt.s32.totalorder %s181, 31
      %s185 = scalar_select %p184, %s181, 31
      %s186 = smul.addr %s183, 32
      %s187 = sadd.s32 %s185, %s186
      %s188 = smul.addr %s187, 8
      %s189 = scalar_lea.vmem %s3, %s188
      %s190 = smul.u32 32, %s19
      %p191 = scmp.lt.s32.totalorder %s18, 1
      %s192 = scalar_select %p191, %s18, 1
      %p193 = scmp.lt.s32.totalorder %s190, 31
      %s194 = scalar_select %p193, %s190, 31
      %s195 = smul.addr %s192, 32
      %s196 = sadd.s32 %s194, %s195
      %s197 = smul.addr %s196, 4
      %s198 = scalar_lea.vmem %s0, %s197
      %s199 = smul.u32 32, %s19
      %s200 = smul.u32 32, %s19
      %p201 = scmp.lt.s32.totalorder %s18, 1
      %s202 = scalar_select %p201, %s18, 1
      %p203 = scmp.lt.s32.totalorder %s200, 31
      %s204 = scalar_select %p203, %s200, 31
      %s205 = smul.addr %s202, 32
      %s206 = sadd.s32 %s204, %s205
      %s207 = smul.addr %s206, 8
      %s208 = scalar_lea.vmem %s3, %s207
      %s209 = smul.u32 32, %s19
      %v210 = vld [vmem:[%s198] sm:$0xf]
      %v211 = vld [vmem:[%s198 + $0x4] sm:$0xf]
      %v212 = vld [vmem:[%s198 + $0x8] sm:$0xf]
      %v213 = vld [vmem:[%s198 + $0xc] sm:$0xf]
      %v214 = vld [vmem:[%s198 + $0x10] sm:$0xf]
      %v215 = vld [vmem:[%s198 + $0x14] sm:$0xf]
      %v216 = vld [vmem:[%s198 + $0x18] sm:$0xf]
      %v217 = vld [vmem:[%s198 + $0x1c] sm:$0xf]
      %v218 = vld [vmem:[%s198 + $0x20] sm:$0xf]
      %v219 = vld [vmem:[%s198 + $0x24] sm:$0xf]
      %v220 = vld [vmem:[%s198 + $0x28] sm:$0xf]
      %v221 = vld [vmem:[%s198 + $0x2c] sm:$0xf]
      %v222 = vld [vmem:[%s198 + $0x30] sm:$0xf]
      %v223 = vld [vmem:[%s198 + $0x34] sm:$0xf]
      %v224 = vld [vmem:[%s198 + $0x38] sm:$0xf]
      %v225 = vld [vmem:[%s198 + $0x3c] sm:$0xf]
      %v226 = vld [vmem:[%s198 + $0x40] sm:$0xf]
      %v227 = vld [vmem:[%s198 + $0x44] sm:$0xf]
      %v228 = vld [vmem:[%s198 + $0x48] sm:$0xf]
      %v229 = vld [vmem:[%s198 + $0x4c] sm:$0xf]
      %v230 = vld [vmem:[%s198 + $0x50] sm:$0xf]
      %v231 = vld [vmem:[%s198 + $0x54] sm:$0xf]
      %v232 = vld [vmem:[%s198 + $0x58] sm:$0xf]
      %v233 = vld [vmem:[%s198 + $0x5c] sm:$0xf]
      %v234 = vld [vmem:[%s198 + $0x60] sm:$0xf]
      %v235 = vld [vmem:[%s198 + $0x64] sm:$0xf]
      %v236 = vld [vmem:[%s198 + $0x68] sm:$0xf]
      %v237 = vld [vmem:[%s198 + $0x6c] sm:$0xf]
      %v238 = vld [vmem:[%s198 + $0x70] sm:$0xf]
      %v239 = vld [vmem:[%s198 + $0x74] sm:$0xf]
      %v240 = vld [vmem:[%s198 + $0x78] sm:$0xf]
      %v241 = vld [vmem:[%s198 + $0x7c] sm:$0xf]
      %v242 = vunpack.c.l.bf16 %v210
      %v243 = vunpack.c.l.bf16 %v211
      %v244 = vunpack.c.l.bf16 %v212
      %v245 = vunpack.c.l.bf16 %v213
      %v246 = vunpack.c.l.bf16 %v214
      %v247 = vunpack.c.l.bf16 %v215
      %v248 = vunpack.c.l.bf16 %v216
      %v249 = vunpack.c.l.bf16 %v217
      %v250 = vunpack.c.l.bf16 %v218
      %v251 = vunpack.c.l.bf16 %v219
      %v252 = vunpack.c.l.bf16 %v220
      %v253 = vunpack.c.l.bf16 %v221
      %v254 = vunpack.c.l.bf16 %v222
      %v255 = vunpack.c.l.bf16 %v223
      %v256 = vunpack.c.l.bf16 %v224
      %v257 = vunpack.c.l.bf16 %v225
      %v258 = vunpack.c.l.bf16 %v226
      %v259 = vunpack.c.l.bf16 %v227
      %v260 = vunpack.c.l.bf16 %v228
      %v261 = vunpack.c.l.bf16 %v229
      %v262 = vunpack.c.l.bf16 %v230
      %v263 = vunpack.c.l.bf16 %v231
      %v264 = vunpack.c.l.bf16 %v232
      %v265 = vunpack.c.l.bf16 %v233
      %v266 = vunpack.c.l.bf16 %v234
      %v267 = vunpack.c.l.bf16 %v235
      %v268 = vunpack.c.l.bf16 %v236
      %v269 = vunpack.c.l.bf16 %v237
      %v270 = vunpack.c.l.bf16 %v238
      %v271 = vunpack.c.l.bf16 %v239
      %v272 = vunpack.c.l.bf16 %v240
      %v273 = vunpack.c.l.bf16 %v241
      %v274 = vld [vmem:[%s1] sm:$0x1]
      %v276 = vperm.slane %v274, 0
      %v278 = vmul.f32 %v242, %v276
      %v279 = vmul.f32 %v243, %v276
      %v280 = vmul.f32 %v244, %v276
      %v281 = vmul.f32 %v245, %v276
      %v282 = vmul.f32 %v246, %v276
      %v283 = vmul.f32 %v247, %v276
      %v284 = vmul.f32 %v248, %v276
      %v285 = vmul.f32 %v249, %v276
      %v286 = vmul.f32 %v250, %v276
      %v287 = vmul.f32 %v251, %v276
      %v288 = vmul.f32 %v252, %v276
      %v289 = vmul.f32 %v253, %v276
      %v290 = vmul.f32 %v254, %v276
      %v291 = vmul.f32 %v255, %v276
      %v292 = vmul.f32 %v256, %v276
      %v293 = vmul.f32 %v257, %v276
      %v294 = vmul.f32 %v258, %v276
      %v295 = vmul.f32 %v259, %v276
      %v296 = vmul.f32 %v260, %v276
      %v297 = vmul.f32 %v261, %v276
      %v298 = vmul.f32 %v262, %v276
      %v299 = vmul.f32 %v263, %v276
      %v300 = vmul.f32 %v264, %v276
      %v301 = vmul.f32 %v265, %v276
      %v302 = vmul.f32 %v266, %v276
      %v303 = vmul.f32 %v267, %v276
      %v304 = vmul.f32 %v268, %v276
      %v305 = vmul.f32 %v269, %v276
      %v306 = vmul.f32 %v270, %v276
      %v307 = vmul.f32 %v271, %v276
      %v308 = vmul.f32 %v272, %v276
      %v309 = vmul.f32 %v273, %v276
      %v310 = vld [vmem:[%s2] sm:$0x1]
      %v312 = vperm.slane %v310, 0
      %v314 = vadd.f32 %v278, %v312
      %v315 = vadd.f32 %v279, %v312
      %v316 = vadd.f32 %v280, %v312
      %v317 = vadd.f32 %v281, %v312
      %v318 = vadd.f32 %v282, %v312
      %v319 = vadd.f32 %v283, %v312
      %v320 = vadd.f32 %v284, %v312
      %v321 = vadd.f32 %v285, %v312
      %v322 = vadd.f32 %v286, %v312
      %v323 = vadd.f32 %v287, %v312
      %v324 = vadd.f32 %v288, %v312
      %v325 = vadd.f32 %v289, %v312
      %v326 = vadd.f32 %v290, %v312
      %v327 = vadd.f32 %v291, %v312
      %v328 = vadd.f32 %v292, %v312
      %v329 = vadd.f32 %v293, %v312
      %v330 = vadd.f32 %v294, %v312
      %v331 = vadd.f32 %v295, %v312
      %v332 = vadd.f32 %v296, %v312
      %v333 = vadd.f32 %v297, %v312
      %v334 = vadd.f32 %v298, %v312
      %v335 = vadd.f32 %v299, %v312
      %v336 = vadd.f32 %v300, %v312
      %v337 = vadd.f32 %v301, %v312
      %v338 = vadd.f32 %v302, %v312
      %v339 = vadd.f32 %v303, %v312
      %v340 = vadd.f32 %v304, %v312
      %v341 = vadd.f32 %v305, %v312
      %v342 = vadd.f32 %v306, %v312
      %v343 = vadd.f32 %v307, %v312
      %v344 = vadd.f32 %v308, %v312
      %v345 = vadd.f32 %v309, %v312
      %v346 = vmax.f32 %v314, 0.0
      %v347 = vmax.f32 %v315, 0.0
      %v348 = vmax.f32 %v316, 0.0
      %v349 = vmax.f32 %v317, 0.0
      %v350 = vmax.f32 %v318, 0.0
      %v351 = vmax.f32 %v319, 0.0
      %v352 = vmax.f32 %v320, 0.0
      %v353 = vmax.f32 %v321, 0.0
      %v354 = vmax.f32 %v322, 0.0
      %v355 = vmax.f32 %v323, 0.0
      %v356 = vmax.f32 %v324, 0.0
      %v357 = vmax.f32 %v325, 0.0
      %v358 = vmax.f32 %v326, 0.0
      %v359 = vmax.f32 %v327, 0.0
      %v360 = vmax.f32 %v328, 0.0
      %v361 = vmax.f32 %v329, 0.0
      %v362 = vmax.f32 %v330, 0.0
      %v363 = vmax.f32 %v331, 0.0
      %v364 = vmax.f32 %v332, 0.0
      %v365 = vmax.f32 %v333, 0.0
      %v366 = vmax.f32 %v334, 0.0
      %v367 = vmax.f32 %v335, 0.0
      %v368 = vmax.f32 %v336, 0.0
      %v369 = vmax.f32 %v337, 0.0
      %v370 = vmax.f32 %v338, 0.0
      %v371 = vmax.f32 %v339, 0.0
      %v372 = vmax.f32 %v340, 0.0
      %v373 = vmax.f32 %v341, 0.0
      %v374 = vmax.f32 %v342, 0.0
      %v375 = vmax.f32 %v343, 0.0
      %v376 = vmax.f32 %v344, 0.0
      %v377 = vmax.f32 %v345, 0.0
      %vm378 = vcmask 261120
      %379 = vst.msk [vmem:[%s208] sm:$0xff] %vm378, %v346
      %380 = vst.msk [vmem:[%s208 + $0x8] sm:$0xff] %vm378, %v347
      %381 = vst.msk [vmem:[%s208 + $0x10] sm:$0xff] %vm378, %v348
      %382 = vst.msk [vmem:[%s208 + $0x18] sm:$0xff] %vm378, %v349
      %383 = vst.msk [vmem:[%s208 + $0x20] sm:$0xff] %vm378, %v350
      %384 = vst.msk [vmem:[%s208 + $0x28] sm:$0xff] %vm378, %v351
      %385 = vst.msk [vmem:[%s208 + $0x30] sm:$0xff] %vm378, %v352
      %386 = vst.msk [vmem:[%s208 + $0x38] sm:$0xff] %vm378, %v353
      %387 = vst.msk [vmem:[%s208 + $0x40] sm:$0xff] %vm378, %v354
      %388 = vst.msk [vmem:[%s208 + $0x48] sm:$0xff] %vm378, %v355
      %389 = vst.msk [vmem:[%s208 + $0x50] sm:$0xff] %vm378, %v356
      %390 = vst.msk [vmem:[%s208 + $0x58] sm:$0xff] %vm378, %v357
      %391 = vst.msk [vmem:[%s208 + $0x60] sm:$0xff] %vm378, %v358
      %392 = vst.msk [vmem:[%s208 + $0x68] sm:$0xff] %vm378, %v359
      %393 = vst.msk [vmem:[%s208 + $0x70] sm:$0xff] %vm378, %v360
      %394 = vst.msk [vmem:[%s208 + $0x78] sm:$0xff] %vm378, %v361
      %395 = vst.msk [vmem:[%s208 + $0x80] sm:$0xff] %vm378, %v362
      %396 = vst.msk [vmem:[%s208 + $0x88] sm:$0xff] %vm378, %v363
      %397 = vst.msk [vmem:[%s208 + $0x90] sm:$0xff] %vm378, %v364
      %398 = vst.msk [vmem:[%s208 + $0x98] sm:$0xff] %vm378, %v365
      %399 = vst.msk [vmem:[%s208 + $0xa0] sm:$0xff] %vm378, %v366
      %400 = vst.msk [vmem:[%s208 + $0xa8] sm:$0xff] %vm378, %v367
      %401 = vst.msk [vmem:[%s208 + $0xb0] sm:$0xff] %vm378, %v368
      %402 = vst.msk [vmem:[%s208 + $0xb8] sm:$0xff] %vm378, %v369
      %403 = vst.msk [vmem:[%s208 + $0xc0] sm:$0xff] %vm378, %v370
      %404 = vst.msk [vmem:[%s208 + $0xc8] sm:$0xff] %vm378, %v371
      %405 = vst.msk [vmem:[%s208 + $0xd0] sm:$0xff] %vm378, %v372
      %406 = vst.msk [vmem:[%s208 + $0xd8] sm:$0xff] %vm378, %v373
      %407 = vst.msk [vmem:[%s208 + $0xe0] sm:$0xff] %vm378, %v374
      %408 = vst.msk [vmem:[%s208 + $0xe8] sm:$0xff] %vm378, %v375
      %409 = vst.msk [vmem:[%s208 + $0xf0] sm:$0xff] %vm378, %v376
      %410 = vst.msk [vmem:[%s208 + $0xf8] sm:$0xff] %vm378, %v377
      %s411 = smul.u32 32, %s19
      %p412 = scmp.lt.s32.totalorder %s18, 1
      %s413 = scalar_select %p412, %s18, 1
      %p414 = scmp.lt.s32.totalorder %s411, 31
      %s415 = scalar_select %p414, %s411, 31
      %s416 = smul.addr %s413, 32
      %s417 = sadd.s32 %s415, %s416
      %s418 = smul.addr %s417, 8
      %s419 = scalar_lea.vmem %s3, %s418
      // Predicated region
      $region33: #{up_conv_forward.3} parent=31 // pred_check
        %p420 = pneg %p116
      $region34: #{up_conv_forward.3} parent=31 // pred_check_branch
        %422 = sbr.rel (%p420) target = $region36
      $region35: #{up_conv_forward.3} parent=31 // pred_region
        %s423 = smul.u32 32, %s19
      $region36: #{up_conv_forward.3} parent=31 // pred_fallthru
        _
    $region32: #{up_conv_forward.3} parent=5 // pred_fallthru
      _
    %p424 = scmp.le.s32.totalorder 2, %s9
    // Predicated region
    $region37: #{up_conv_forward.3} parent=5 // pred_check
      %p425 = pneg %p424
    $region38: #{up_conv_forward.3} parent=5 // pred_check_branch
      %427 = sbr.rel (%p425) target = $region40
    $region39: #{up_conv_forward.3} parent=5 // pred_region
      %s428 = ssub.s32 %s9, 2
      // Predicated region
      $region41: #{up_conv_forward.3} parent=39 // pred_check
        %p429 = pneg %p122
      $region42: #{up_conv_forward.3} parent=39 // pred_check_branch
        %431 = sbr.rel (%p429) target = $region44
      $region43: #{up_conv_forward.3} parent=39 // pred_region
        %s432 = smul.u32 32, %s21
        %p433 = scmp.lt.s32.totalorder %s20, 1
        %s434 = scalar_select %p433, %s20, 1
        %p435 = scmp.lt.s32.totalorder %s432, 31
        %s436 = scalar_select %p435, %s432, 31
        %s437 = smul.addr %s434, 32
        %s438 = sadd.s32 %s436, %s437
        %s439 = smul.addr %s438, 8
        %s440 = scalar_lea.vmem %s3, %s439
      $region44: #{up_conv_forward.3} parent=39 // pred_fallthru
        _
    $region40: #{up_conv_forward.3} parent=5 // pred_fallthru
      _
  $region6: #{up_conv_forward.3} parent=0 // loop_footer
    %s13 = sadd.s32 1, %s9
  $region7: #{up_conv_forward.3} parent=0 // loop_footer_branch
    %8 = sbr.rel target = $region3
  $region8: #{up_conv_forward.3} parent=0 // loop_exit
    _

// kernel: up_conv_forward.2
$region0: #{up_conv_forward.2}
  #allocation0 [shape = 'u32[]', space=smem, size = 0x4, offset = 0x4, fixed_abs, tag = 'smem constant byte address 0x4 - core index']
  #allocation1 [shape = 'u32[72,128]{1,0:T(1,128)}', space=vmem, size = 0x9000, scoped, tag = 'internal scratch']
  %s0 = inlined_call_operand.vmem [shape: bf16[2,18,18,4], index: 0, kind: input, shape index: {}]
  %s1 = inlined_call_operand.vmem [shape: bf16[36,32], index: 1, kind: input, shape index: {}]
  %s2 = inlined_call_operand.vmem [shape: bf16[2,256,32], index: 2, kind: output, shape index: {0}]
  %s3 = inlined_call_operand.vmem [shape: f32[2,1,32], index: 3, kind: output, shape index: {1}]
  %s4 = inlined_call_operand.vmem [shape: f32[2,1,32], index: 4, kind: output, shape index: {2}]
  %5 = xla_tuple %s2, %s3, %s4
  %s6 = sld [smem:[#allocation0]]
  $region61: #{up_conv_forward.2} parent=0
    _
  %s8 = ssub.s32 1, %s6
  %s9 = scalar_select 0, %s8, %s6
  loop: start=0, step=1, limit=4
  $region2: #{up_conv_forward.2} parent=0 // loop_pre_header
    _
  $region3: #{up_conv_forward.2} parent=0 // loop_header
    %s11 = sphi 0, %s15
    %p12 = scmp.ge.s32.totalorder %s11, 4
    %s18 = sphi 0, %s30
    %s19 = sphi 0, %s26
    %s20 = sphi 0, %s18
    %s21 = sphi 0, %s19
    %s22 = sphi 0, %s20
    %s23 = sphi 0, %s21
    %s35 = sphi 0, %s37
    %s38 = sphi 0, %s35
    %s39 = sphi 0, %s38
    %s55 = sphi 0, %s39
    %s59 = sphi 0, %s59
    %s61 = sphi 0, %s59
    %s62 = sphi 0, %s61
    %s76 = sphi 0, %s62
    %s84 = sphi 0, %s86
    %s87 = sphi 0, %s84
    %s88 = sphi 0, %s87
    %s104 = sphi 0, %s88
    %s110 = sphi 0, %s112
    %s113 = sphi 0, %s110
    %s114 = sphi 0, %s113
    %s130 = sphi 0, %s114
    %s136 = sphi 0, %s138
    %s139 = sphi 0, %s136
    %s140 = sphi 0, %s139
    %s156 = sphi 0, %s140
  $region4: #{up_conv_forward.2} parent=0 // loop_header_branch
    %14 = sbr.rel (%p12) target = $region8
  $region5: #{up_conv_forward.2} parent=0 // loop_body
    %s16 = ssub.s32 %s11, 1
    %s17 = ssub.s32 %s11, 2
    %s24 = sadd.s32 1, %s19
    %p25 = scmp.ge.s32.totalorder %s24, 1
    %s26 = scalar_select %p25, 0, %s24
    %s27 = sadd.s32 1, %s18
    %s28 = scalar_select %p25, %s27, %s18
    %p29 = scmp.ge.s32.totalorder %s28, 2
    %s30 = scalar_select %p29, 0, %s28
    %s31 = sadd.s32 %s18, %s19
    %s32 = sadd.s32 %s30, %s26
    %s33 = ssub.s32 %s31, %s32
    %p34 = scmp.eq.s32.totalorder %s33, 0
    %s36 = sadd.s32 %s35, 1
    %s37 = scalar_select %p34, %s35, %s36
    %p40 = pneg %p34
    %p41 = scmp.eq.s32.totalorder %s11, 1
    %p42 = por %p40, %p41
    %p43 = scmp.ne.s32.totalorder %s35, %s38
    %p44 = scmp.eq.s32.totalorder %s11, 0
    %p45 = por %p43, %p44
    %p46 = scmp.ne.s32.totalorder %s35, %s38
    %p47 = scmp.eq.s32.totalorder %s16, 1
    %p48 = por %p46, %p47
    %p49 = scmp.ne.s32.totalorder %s38, %s39
    %p50 = scmp.eq.s32.totalorder %s16, 0
    %p51 = por %p49, %p50
    %p52 = scmp.ne.s32.totalorder %s38, %s39
    %p53 = scmp.eq.s32.totalorder %s17, 1
    %p54 = por %p52, %p53
    %p56 = scmp.ne.s32.totalorder %s39, %s55
    %p57 = scmp.eq.s32.totalorder %s17, 0
    %p58 = por %p56, %p57
    %s60 = sadd.s32 %s59, 1
    %p63 = scmp.eq.s32.totalorder %s11, 1
    %p64 = scmp.ne.s32.totalorder %s59, %s61
    %p65 = scmp.eq.s32.totalorder %s11, 0
    %p66 = por %p64, %p65
    %p67 = scmp.ne.s32.totalorder %s59, %s61
    %p68 = scmp.eq.s32.totalorder %s16, 1
    %p69 = por %p67, %p68
    %p70 = scmp.ne.s32.totalorder %s61, %s62
    %p71 = scmp.eq.s32.totalorder %s16, 0
    %p72 = por %p70, %p71
    %p73 = scmp.ne.s32.totalorder %s61, %s62
    %p74 = scmp.eq.s32.totalorder %s17, 1
    %p75 = por %p73, %p74
    %p77 = scmp.ne.s32.totalorder %s62, %s76
    %p78 = scmp.eq.s32.totalorder %s17, 0
    %p79 = por %p77, %p78
    %s80 = ssub.s32 %s18, %s30
    %s81 = ssub.s32 %s19, %s26
    %s82 = sor.u32 %s80, %s81
    %p83 = scmp.eq.s32.totalorder %s82, 0
    %s85 = sadd.s32 %s84, 1
    %s86 = scalar_select %p83, %s84, %s85
    %p89 = pneg %p83
    %p90 = scmp.eq.s32.totalorder %s11, 1
    %p91 = por %p89, %p90
    %p92 = scmp.ne.s32.totalorder %s84, %s87
    %p93 = scmp.eq.s32.totalorder %s11, 0
    %p94 = por %p92, %p93
    %p95 = scmp.ne.s32.totalorder %s84, %s87
    %p96 = scmp.eq.s32.totalorder %s16, 1
    %p97 = por %p95, %p96
    %p98 = scmp.ne.s32.totalorder %s87, %s88
    %p99 = scmp.eq.s32.totalorder %s16, 0
    %p100 = por %p98, %p99
    %p101 = scmp.ne.s32.totalorder %s87, %s88
    %p102 = scmp.eq.s32.totalorder %s17, 1
    %p103 = por %p101, %p102
    %p105 = scmp.ne.s32.totalorder %s88, %s104
    %p106 = scmp.eq.s32.totalorder %s17, 0
    %p107 = por %p105, %p106
    %s108 = ssub.s32 %s18, %s30
    %p109 = scmp.eq.s32.totalorder %s108, 0
    %s111 = sadd.s32 %s110, 1
    %s112 = scalar_select %p109, %s110, %s111
    %p115 = pneg %p109
    %p116 = scmp.eq.s32.totalorder %s11, 1
    %p117 = por %p115, %p116
    %p118 = scmp.ne.s32.totalorder %s110, %s113
    %p119 = scmp.eq.s32.totalorder %s11, 0
    %p120 = por %p118, %p119
    %p121 = scmp.ne.s32.totalorder %s110, %s113
    %p122 = scmp.eq.s32.totalorder %s16, 1
    %p123 = por %p121, %p122
    %p124 = scmp.ne.s32.totalorder %s113, %s114
    %p125 = scmp.eq.s32.totalorder %s16, 0
    %p126 = por %p124, %p125
    %p127 = scmp.ne.s32.totalorder %s113, %s114
    %p128 = scmp.eq.s32.totalorder %s17, 1
    %p129 = por %p127, %p128
    %p131 = scmp.ne.s32.totalorder %s114, %s130
    %p132 = scmp.eq.s32.totalorder %s17, 0
    %p133 = por %p131, %p132
    %s134 = ssub.s32 %s18, %s30
    %p135 = scmp.eq.s32.totalorder %s134, 0
    %s137 = sadd.s32 %s136, 1
    %s138 = scalar_select %p135, %s136, %s137
    %p141 = pneg %p135
    %p142 = scmp.eq.s32.totalorder %s11, 1
    %p143 = por %p141, %p142
    %p144 = scmp.ne.s32.totalorder %s136, %s139
    %p145 = scmp.eq.s32.totalorder %s11, 0
    %p146 = por %p144, %p145
    %p147 = scmp.ne.s32.totalorder %s136, %s139
    %p148 = scmp.eq.s32.totalorder %s16, 1
    %p149 = por %p147, %p148
    %p150 = scmp.ne.s32.totalorder %s139, %s140
    %p151 = scmp.eq.s32.totalorder %s16, 0
    %p152 = por %p150, %p151
    %p153 = scmp.ne.s32.totalorder %s139, %s140
    %p154 = scmp.eq.s32.totalorder %s17, 1
    %p155 = por %p153, %p154
    %p157 = scmp.ne.s32.totalorder %s140, %s156
    %p158 = scmp.eq.s32.totalorder %s17, 0
    %p159 = por %p157, %p158
    %p160 = scmp.le.s32.totalorder 1, %s11
    %p161 = scmp.lt.s32.totalorder %s11, 3
    %p162 = pnand %p160, %p161
    %p163 = pneg %p162
    // Predicated region
    $region9: #{up_conv_forward.2} parent=5 // pred_check
      _
    $region10: #{up_conv_forward.2} parent=5 // pred_check_branch
      %165 = sbr.rel (%p162) target = $region12
    $region11: #{up_conv_forward.2} parent=5 // pred_region
      %s166 = ssub.s32 %s11, 1
      // Predicated region
      $region13: #{up_conv_forward.2} parent=11 // pred_check
        %p167 = pneg %p72
      $region14: #{up_conv_forward.2} parent=11 // pred_check_branch
        %169 = sbr.rel (%p167) target = $region16
      $region15: #{up_conv_forward.2} parent=11 // pred_region
        _
      $region16: #{up_conv_forward.2} parent=11 // pred_fallthru
        _
    $region12: #{up_conv_forward.2} parent=5 // pred_fallthru
      _
    %p170 = scmp.lt.s32.totalorder %s11, 2
    // Predicated region
    $region17: #{up_conv_forward.2} parent=5 // pred_check
      %p171 = pneg %p170
    $region18: #{up_conv_forward.2} parent=5 // pred_check_branch
      %173 = sbr.rel (%p171) target = $region20
    $region19: #{up_conv_forward.2} parent=5 // pred_region
      // Predicated region
      $region21: #{up_conv_forward.2} parent=19 // pred_check
        %p174 = pneg %p45
      $region22: #{up_conv_forward.2} parent=19 // pred_check_branch
        %176 = sbr.rel (%p174) target = $region24
      $region23: #{up_conv_forward.2} parent=19 // pred_region
        %s177 = sadd.s32 %s18, %s19
        %p178 = scmp.lt.s32.totalorder %s177, 1
        %s179 = scalar_select %p178, %s177, 1
        %s180 = smul.addr %s179, 54
        %s181 = smul.addr %s180, 4
        %s182 = scalar_lea.vmem %s0, %s181
        %s183 = sadd.s32 %s18, %s19
      $region24: #{up_conv_forward.2} parent=19 // pred_fallthru
        _
    $region20: #{up_conv_forward.2} parent=5 // pred_fallthru
      _
    %p184 = scmp.le.s32.totalorder 1, %s11
    %p185 = scmp.lt.s32.totalorder %s11, 3
    %p186 = pnand %p184, %p185
    %p187 = pneg %p186
    // Predicated region
    $region25: #{up_conv_forward.2} parent=5 // pred_check
      _
    $region26: #{up_conv_forward.2} parent=5 // pred_check_branch
      %189 = sbr.rel (%p186) target = $region28
    $region27: #{up_conv_forward.2} parent=5 // pred_region
      %s190 = ssub.s32 %s11, 1
      %s191 = sadd.s32 %s20, %s21
      %p192 = scmp.lt.s32.totalorder %s191, 1
      %s193 = scalar_select %p192, %s191, 1
      %s194 = smul.addr %s193, 54
      %s195 = smul.addr %s194, 4
      %s196 = scalar_lea.vmem %s0, %s195
      %p197 = pneg %p51
      %p198 = pneg %p48
      %p199 = pneg %p72
      %p200 = pneg %p69
      %p201 = pneg %p100
      %p202 = pneg %p97
      %s203 = smul.u32 32, %s21
      %p204 = scmp.lt.s32.totalorder %s20, 1
      %s205 = scalar_select %p204, %s20, 1
      %p206 = scmp.lt.s32.totalorder %s203, 31
      %s207 = scalar_select %p206, %s203, 31
      %s208 = smul.addr %s205, 32
      %s209 = sadd.s32 %s207, %s208
      %s210 = smul.addr %s209, 4
      %s211 = scalar_lea.vmem %s2, %s210
      %p212 = pneg %p126
      %p213 = pneg %p123
      %p214 = scmp.lt.s32.totalorder %s20, 1
      %s215 = scalar_select %p214, %s20, 1
      %s216 = scalar_lea.vmem %s3, %s215
      %p217 = pneg %p152
      %p218 = pneg %p149
      %p219 = scmp.lt.s32.totalorder %s20, 1
      %s220 = scalar_select %p219, %s20, 1
      %s221 = scalar_lea.vmem %s4, %s220
      %s222 = sadd.s32 %s20, %s21
      %p223 = scmp.lt.s32.totalorder %s222, 1
      %s224 = scalar_select %p223, %s222, 1
      %s225 = smul.addr %s224, 54
      %s226 = smul.addr %s225, 4
      %s227 = scalar_lea.vmem %s0, %s226
      %s228 = sadd.s32 %s20, %s21
      %s229 = smul.u32 32, %s21
      %p230 = scmp.lt.s32.totalorder %s20, 1
      %s231 = scalar_select %p230, %s20, 1
      %p232 = scmp.lt.s32.totalorder %s229, 31
      %s233 = scalar_select %p232, %s229, 31
      %s234 = smul.addr %s231, 32
      %s235 = sadd.s32 %s233, %s234
      %s236 = smul.addr %s235, 4
      %s237 = scalar_lea.vmem %s2, %s236
      %s238 = smul.u32 32, %s21
      %p239 = scmp.lt.s32.totalorder %s20, 1
      %s240 = scalar_select %p239, %s20, 1
      %s241 = scalar_lea.vmem %s3, %s240
      %p242 = scmp.lt.s32.totalorder %s20, 1
      %s243 = scalar_select %p242, %s20, 1
      %s244 = scalar_lea.vmem %s4, %s243
      %v246 = vld [vmem:[%s227] sm:$0xf]
      %v247 = vld [vmem:[%s227 + $0x4] sm:$0xf]
      %v248 = vld [vmem:[%s227 + $0x8] sm:$0x1]
      %v249 = vld [vmem:[%s227 + $0xc] sm:$0xf]
      %v250 = vld [vmem:[%s227 + $0x10] sm:$0xf]
      %v251 = vld [vmem:[%s227 + $0x14] sm:$0x1]
      %v252 = vld [vmem:[%s227 + $0x18] sm:$0xf]
      %v253 = vld [vmem:[%s227 + $0x1c] sm:$0xf]
      %v254 = vld [vmem:[%s227 + $0x20] sm:$0x1]
      %v255 = vld [vmem:[%s227 + $0x24] sm:$0xf]
      %v256 = vld [vmem:[%s227 + $0x28] sm:$0xf]
      %v257 = vld [vmem:[%s227 + $0x2c] sm:$0x1]
      %v258 = vld [vmem:[%s227 + $0x30] sm:$0xf]
      %v259 = vld [vmem:[%s227 + $0x34] sm:$0xf]
      %v260 = vld [vmem:[%s227 + $0x38] sm:$0x1]
      %v261 = vld [vmem:[%s227 + $0x3c] sm:$0xf]
      %v262 = vld [vmem:[%s227 + $0x40] sm:$0xf]
      %v263 = vld [vmem:[%s227 + $0x44] sm:$0x1]
      %v264 = vld [vmem:[%s227 + $0x48] sm:$0xf]
      %v265 = vld [vmem:[%s227 + $0x4c] sm:$0xf]
      %v266 = vld [vmem:[%s227 + $0x50] sm:$0x1]
      %v267 = vld [vmem:[%s227 + $0x54] sm:$0xf]
      %v268 = vld [vmem:[%s227 + $0x58] sm:$0xf]
      %v269 = vld [vmem:[%s227 + $0x5c] sm:$0x1]
      %v270 = vld [vmem:[%s227 + $0x60] sm:$0xf]
      %v271 = vld [vmem:[%s227 + $0x64] sm:$0xf]
      %v272 = vld [vmem:[%s227 + $0x68] sm:$0x1]
      %v273 = vld [vmem:[%s227 + $0x6c] sm:$0xf]
      %v274 = vld [vmem:[%s227 + $0x70] sm:$0xf]
      %v275 = vld [vmem:[%s227 + $0x74] sm:$0x1]
      %v276 = vld [vmem:[%s227 + $0x78] sm:$0xf]
      %v277 = vld [vmem:[%s227 + $0x7c] sm:$0xf]
      %v278 = vld [vmem:[%s227 + $0x80] sm:$0x1]
      %v279 = vld [vmem:[%s227 + $0x84] sm:$0xf]
      %v280 = vld [vmem:[%s227 + $0x88] sm:$0xf]
      %v281 = vld [vmem:[%s227 + $0x8c] sm:$0x1]
      %v282 = vld [vmem:[%s227 + $0x90] sm:$0xf]
      %v283 = vld [vmem:[%s227 + $0x94] sm:$0xf]
      %v284 = vld [vmem:[%s227 + $0x98] sm:$0x1]
      %v285 = vld [vmem:[%s227 + $0x9c] sm:$0xf]
      %v286 = vld [vmem:[%s227 + $0xa0] sm:$0xf]
      %v287 = vld [vmem:[%s227 + $0xa4] sm:$0x1]
      %v288 = vld [vmem:[%s227 + $0xa8] sm:$0xf]
      %v289 = vld [vmem:[%s227 + $0xac] sm:$0xf]
      %v290 = vld [vmem:[%s227 + $0xb0] sm:$0x1]
      %v291 = vld [vmem:[%s227 + $0xb4] sm:$0xf]
      %v292 = vld [vmem:[%s227 + $0xb8] sm:$0xf]
      %v293 = vld [vmem:[%s227 + $0xbc] sm:$0x1]
      %v294 = vld [vmem:[%s227 + $0xc0] sm:$0xf]
      %v295 = vld [vmem:[%s227 + $0xc4] sm:$0xf]
      %v296 = vld [vmem:[%s227 + $0xc8] sm:$0x1]
      %v297 = vld [vmem:[%s227 + $0xcc] sm:$0xf]
      %v298 = vld [vmem:[%s227 + $0xd0] sm:$0xf]
      %v299 = vld [vmem:[%s227 + $0xd4] sm:$0x1]
      %v336 = vunpack.c.l.b16 %v246
      %v337 = vunpack.c.l.b16 %v247
      %v338 = vunpack.c.l.b16 %v249
      %v339 = vunpack.c.l.b16 %v250
      %v340 = vunpack.c.l.b16 %v252
      %v341 = vunpack.c.l.b16 %v253
      %v342 = vunpack.c.l.b16 %v255
      %v343 = vunpack.c.l.b16 %v256
      %v344 = vunpack.c.l.b16 %v258
      %v345 = vunpack.c.l.b16 %v259
      %v346 = vunpack.c.l.b16 %v261
      %v347 = vunpack.c.l.b16 %v262
      %v348 = vunpack.c.l.b16 %v264
      %v349 = vunpack.c.l.b16 %v265
      %v350 = vunpack.c.l.b16 %v267
      %v351 = vunpack.c.l.b16 %v268
      %v352 = vunpack.c.l.b16 %v270
      %v353 = vunpack.c.l.b16 %v271
      %v354 = vunpack.c.l.b16 %v273
      %v355 = vunpack.c.l.b16 %v274
      %v356 = vunpack.c.l.b16 %v276
      %v357 = vunpack.c.l.b16 %v277
      %v358 = vunpack.c.l.b16 %v279
      %v359 = vunpack.c.l.b16 %v280
      %v360 = vunpack.c.l.b16 %v282
      %v361 = vunpack.c.l.b16 %v283
      %v362 = vunpack.c.l.b16 %v285
      %v363 = vunpack.c.l.b16 %v286
      %v364 = vunpack.c.l.b16 %v288
      %v365 = vunpack.c.l.b16 %v289
      %v366 = vunpack.c.l.b16 %v291
      %v367 = vunpack.c.l.b16 %v292
      %v368 = vunpack.c.l.b16 %v294
      %v369 = vunpack.c.l.b16 %v295
      %v370 = vunpack.c.l.b16 %v297
      %v371 = vunpack.c.l.b16 %v298
      %v372 = vpack.c.b16 %v337, %v336
      %v373 = vpack.c.b16 %v339, %v338
      %v374 = vpack.c.b16 %v341, %v340
      %v375 = vpack.c.b16 %v343, %v342
      %v376 = vpack.c.b16 %v345, %v344
      %v377 = vpack.c.b16 %v347, %v346
      %v378 = vpack.c.b16 %v349, %v348
      %v379 = vpack.c.b16 %v351, %v350
      %v380 = vpack.c.b16 %v353, %v352
      %v381 = vpack.c.b16 %v355, %v354
      %v382 = vpack.c.b16 %v357, %v356
      %v383 = vpack.c.b16 %v359, %v358
      %v384 = vpack.c.b16 %v361, %v360
      %v385 = vpack.c.b16 %v363, %v362
      %v386 = vpack.c.b16 %v365, %v364
      %v387 = vpack.c.b16 %v367, %v366
      %v388 = vpack.c.b16 %v369, %v368
      %v389 = vpack.c.b16 %v371, %v370
      %v408 = vunpack.c.l.b16 %v248
      %v409 = vunpack.c.l.b16 %v251
      %v410 = vunpack.c.l.b16 %v254
      %v411 = vunpack.c.l.b16 %v257
      %v412 = vunpack.c.l.b16 %v260
      %v413 = vunpack.c.l.b16 %v263
      %v414 = vunpack.c.l.b16 %v266
      %v415 = vunpack.c.l.b16 %v269
      %v416 = vunpack.c.l.b16 %v272
      %v417 = vunpack.c.l.b16 %v275
      %v418 = vunpack.c.l.b16 %v278
      %v419 = vunpack.c.l.b16 %v281
      %v420 = vunpack.c.l.b16 %v284
      %v421 = vunpack.c.l.b16 %v287
      %v422 = vunpack.c.l.b16 %v290
      %v423 = vunpack.c.l.b16 %v293
      %v424 = vunpack.c.l.b16 %v296
      %v425 = vunpack.c.l.b16 %v299
      %v426 = vpack.c.b16 %v408, %v408
      %v427 = vpack.c.b16 %v409, %v409
      %v428 = vpack.c.b16 %v410, %v410
      %v429 = vpack.c.b16 %v411, %v411
      %v430 = vpack.c.b16 %v412, %v412
      %v431 = vpack.c.b16 %v413, %v413
      %v432 = vpack.c.b16 %v414, %v414
      %v433 = vpack.c.b16 %v415, %v415
      %v434 = vpack.c.b16 %v416, %v416
      %v435 = vpack.c.b16 %v417, %v417
      %v436 = vpack.c.b16 %v418, %v418
      %v437 = vpack.c.b16 %v419, %v419
      %v438 = vpack.c.b16 %v420, %v420
      %v439 = vpack.c.b16 %v421, %v421
      %v440 = vpack.c.b16 %v422, %v422
      %v441 = vpack.c.b16 %v423, %v423
      %v442 = vpack.c.b16 %v424, %v424
      %v443 = vpack.c.b16 %v425, %v425
      %vm444 = vsmask.f32 7424
      %v446 = vshrl.u32 %v372, 16
      %v448 = vshll.u32 %v372, 16
      %v450 = vrot.slane %v448, 1
      %v451 = vor.u32 %v446, %v450
      %v453 = vshll.u32 %v426, 16
      %v455 = vrot.slane %v453, 1
      %v456 = vsel %vm444, %v451, %v455
      %v458 = vshrl.u32 %v373, 16
      %v460 = vshll.u32 %v373, 16
      %v462 = vrot.slane %v460, 1
      %v463 = vor.u32 %v458, %v462
      %v465 = vshll.u32 %v427, 16
      %v467 = vrot.slane %v465, 1
      %v468 = vsel %vm444, %v463, %v467
      %v470 = vshrl.u32 %v374, 16
      %v472 = vshll.u32 %v374, 16
      %v474 = vrot.slane %v472, 1
      %v475 = vor.u32 %v470, %v474
      %v477 = vshll.u32 %v428, 16
      %v479 = vrot.slane %v477, 1
      %v480 = vsel %vm444, %v475, %v479
      %v482 = vshrl.u32 %v375, 16
      %v484 = vshll.u32 %v375, 16
      %v486 = vrot.slane %v484, 1
      %v487 = vor.u32 %v482, %v486
      %v489 = vshll.u32 %v429, 16
      %v491 = vrot.slane %v489, 1
      %v492 = vsel %vm444, %v487, %v491
      %v494 = vshrl.u32 %v376, 16
      %v496 = vshll.u32 %v376, 16
      %v498 = vrot.slane %v496, 1
      %v499 = vor.u32 %v494, %v498
      %v501 = vshll.u32 %v430, 16
      %v503 = vrot.slane %v501, 1
      %v504 = vsel %vm444, %v499, %v503
      %v506 = vshrl.u32 %v377, 16
      %v508 = vshll.u32 %v377, 16
      %v510 = vrot.slane %v508, 1
      %v511 = vor.u32 %v506, %v510
      %v513 = vshll.u32 %v431, 16
      %v515 = vrot.slane %v513, 1
      %v516 = vsel %vm444, %v511, %v515
      %v518 = vshrl.u32 %v378, 16
      %v520 = vshll.u32 %v378, 16
      %v522 = vrot.slane %v520, 1
      %v523 = vor.u32 %v518, %v522
      %v525 = vshll.u32 %v432, 16
      %v527 = vrot.slane %v525, 1
      %v528 = vsel %vm444, %v523, %v527
      %v530 = vshrl.u32 %v379, 16
      %v532 = vshll.u32 %v379, 16
      %v534 = vrot.slane %v532, 1
      %v535 = vor.u32 %v530, %v534
      %v537 = vshll.u32 %v433, 16
      %v539 = vrot.slane %v537, 1
      %v540 = vsel %vm444, %v535, %v539
      %v542 = vshrl.u32 %v380, 16
      %v544 = vshll.u32 %v380, 16
      %v546 = vrot.slane %v544, 1
      %v547 = vor.u32 %v542, %v546
      %v549 = vshll.u32 %v434, 16
      %v551 = vrot.slane %v549, 1
      %v552 = vsel %vm444, %v547, %v551
      %v554 = vshrl.u32 %v381, 16
      %v556 = vshll.u32 %v381, 16
      %v558 = vrot.slane %v556, 1
      %v559 = vor.u32 %v554, %v558
      %v561 = vshll.u32 %v435, 16
      %v563 = vrot.slane %v561, 1
      %v564 = vsel %vm444, %v559, %v563
      %v566 = vshrl.u32 %v382, 16
      %v568 = vshll.u32 %v382, 16
      %v570 = vrot.slane %v568, 1
      %v571 = vor.u32 %v566, %v570
      %v573 = vshll.u32 %v436, 16
      %v575 = vrot.slane %v573, 1
      %v576 = vsel %vm444, %v571, %v575
      %v578 = vshrl.u32 %v383, 16
      %v580 = vshll.u32 %v383, 16
      %v582 = vrot.slane %v580, 1
      %v583 = vor.u32 %v578, %v582
      %v585 = vshll.u32 %v437, 16
      %v587 = vrot.slane %v585, 1
      %v588 = vsel %vm444, %v583, %v587
      %v590 = vshrl.u32 %v384, 16
      %v592 = vshll.u32 %v384, 16
      %v594 = vrot.slane %v592, 1
      %v595 = vor.u32 %v590, %v594
      %v597 = vshll.u32 %v438, 16
      %v599 = vrot.slane %v597, 1
      %v600 = vsel %vm444, %v595, %v599
      %v602 = vshrl.u32 %v385, 16
      %v604 = vshll.u32 %v385, 16
      %v606 = vrot.slane %v604, 1
      %v607 = vor.u32 %v602, %v606
      %v609 = vshll.u32 %v439, 16
      %v611 = vrot.slane %v609, 1
      %v612 = vsel %vm444, %v607, %v611
      %v614 = vshrl.u32 %v386, 16
      %v616 = vshll.u32 %v386, 16
      %v618 = vrot.slane %v616, 1
      %v619 = vor.u32 %v614, %v618
      %v621 = vshll.u32 %v440, 16
      %v623 = vrot.slane %v621, 1
      %v624 = vsel %vm444, %v619, %v623
      %v626 = vshrl.u32 %v387, 16
      %v628 = vshll.u32 %v387, 16
      %v630 = vrot.slane %v628, 1
      %v631 = vor.u32 %v626, %v630
      %v633 = vshll.u32 %v441, 16
      %v635 = vrot.slane %v633, 1
      %v636 = vsel %vm444, %v631, %v635
      %v638 = vshrl.u32 %v388, 16
      %v640 = vshll.u32 %v388, 16
      %v642 = vrot.slane %v640, 1
      %v643 = vor.u32 %v638, %v642
      %v645 = vshll.u32 %v442, 16
      %v647 = vrot.slane %v645, 1
      %v648 = vsel %vm444, %v643, %v647
      %v650 = vshrl.u32 %v389, 16
      %v652 = vshll.u32 %v389, 16
      %v654 = vrot.slane %v652, 1
      %v655 = vor.u32 %v650, %v654
      %v657 = vshll.u32 %v443, 16
      %v659 = vrot.slane %v657, 1
      %v660 = vsel %vm444, %v655, %v659
      %661 = vrot.lane.b32.xlu0 %v456, 4
      %v662 = vpop.permute.xlu0 %661
      %663 = vrot.lane.b32.xlu0 %v468, 4
      %v664 = vpop.permute.xlu0 %663
      %665 = vrot.lane.b32.xlu0 %v480, 4
      %v666 = vpop.permute.xlu0 %665
      %667 = vrot.lane.b32.xlu0 %v492, 4
      %v668 = vpop.permute.xlu0 %667
      %669 = vrot.lane.b32.xlu0 %v504, 4
      %v670 = vpop.permute.xlu0 %669
      %671 = vrot.lane.b32.xlu0 %v516, 4
      %v672 = vpop.permute.xlu0 %671
      %673 = vrot.lane.b32.xlu0 %v528, 4
      %v674 = vpop.permute.xlu0 %673
      %675 = vrot.lane.b32.xlu0 %v540, 4
      %v676 = vpop.permute.xlu0 %675
      %677 = vrot.lane.b32.xlu0 %v552, 4
      %v678 = vpop.permute.xlu0 %677
      %679 = vrot.lane.b32.xlu0 %v564, 4
      %v680 = vpop.permute.xlu0 %679
      %681 = vrot.lane.b32.xlu0 %v576, 4
      %v682 = vpop.permute.xlu0 %681
      %683 = vrot.lane.b32.xlu0 %v588, 4
      %v684 = vpop.permute.xlu0 %683
      %685 = vrot.lane.b32.xlu0 %v600, 4
      %v686 = vpop.permute.xlu0 %685
      %687 = vrot.lane.b32.xlu0 %v612, 4
      %v688 = vpop.permute.xlu0 %687
      %689 = vrot.lane.b32.xlu0 %v624, 4
      %v690 = vpop.permute.xlu0 %689
      %691 = vrot.lane.b32.xlu0 %v636, 4
      %v692 = vpop.permute.xlu0 %691
      %693 = vrot.lane.b32.xlu0 %v648, 4
      %v694 = vpop.permute.xlu0 %693
      %695 = vrot.lane.b32.xlu0 %v660, 4
      %v696 = vpop.permute.xlu0 %695
      %vm697 = vcmask 1046528
      %v698 = vrot.slane %v372, 1
      %v699 = vrot.slane %v426, 1
      %v700 = vsel %vm697, %v698, %v699
      %v701 = vrot.slane %v373, 1
      %v702 = vrot.slane %v427, 1
      %v703 = vsel %vm697, %v701, %v702
      %v704 = vrot.slane %v374, 1
      %v705 = vrot.slane %v428, 1
      %v706 = vsel %vm697, %v704, %v705
      %v707 = vrot.slane %v375, 1
      %v708 = vrot.slane %v429, 1
      %v709 = vsel %vm697, %v707, %v708
      %v710 = vrot.slane %v376, 1
      %v711 = vrot.slane %v430, 1
      %v712 = vsel %vm697, %v710, %v711
      %v713 = vrot.slane %v377, 1
      %v714 = vrot.slane %v431, 1
      %v715 = vsel %vm697, %v713, %v714
      %v716 = vrot.slane %v378, 1
      %v717 = vrot.slane %v432, 1
      %v718 = vsel %vm697, %v716, %v717
      %v719 = vrot.slane %v379, 1
      %v720 = vrot.slane %v433, 1
      %v721 = vsel %vm697, %v719, %v720
      %v722 = vrot.slane %v380, 1
      %v723 = vrot.slane %v434, 1
      %v724 = vsel %vm697, %v722, %v723
      %v725 = vrot.slane %v381, 1
      %v726 = vrot.slane %v435, 1
      %v727 = vsel %vm697, %v725, %v726
      %v728 = vrot.slane %v382, 1
      %v729 = vrot.slane %v436, 1
      %v730 = vsel %vm697, %v728, %v729
      %v731 = vrot.slane %v383, 1
      %v732 = vrot.slane %v437, 1
      %v733 = vsel %vm697, %v731, %v732
      %v734 = vrot.slane %v384, 1
      %v735 = vrot.slane %v438, 1
      %v736 = vsel %vm697, %v734, %v735
      %v737 = vrot.slane %v385, 1
      %v738 = vrot.slane %v439, 1
      %v739 = vsel %vm697, %v737, %v738
      %v740 = vrot.slane %v386, 1
      %v741 = vrot.slane %v440, 1
      %v742 = vsel %vm697, %v740, %v741
      %v743 = vrot.slane %v387, 1
      %v744 = vrot.slane %v441, 1
      %v745 = vsel %vm697, %v743, %v744
      %v746 = vrot.slane %v388, 1
      %v747 = vrot.slane %v442, 1
      %v748 = vsel %vm697, %v746, %v747
      %v749 = vrot.slane %v389, 1
      %v750 = vrot.slane %v443, 1
      %v751 = vsel %vm697, %v749, %v750
      %752 = vrot.lane.b32.xlu0 %v700, 8
      %v753 = vpop.permute.xlu0 %752
      %754 = vrot.lane.b32.xlu0 %v703, 8
      %v755 = vpop.permute.xlu0 %754
      %756 = vrot.lane.b32.xlu0 %v706, 8
      %v757 = vpop.permute.xlu0 %756
      %758 = vrot.lane.b32.xlu0 %v709, 8
      %v759 = vpop.permute.xlu0 %758
      %760 = vrot.lane.b32.xlu0 %v712, 8
      %v761 = vpop.permute.xlu0 %760
      %762 = vrot.lane.b32.xlu0 %v715, 8
      %v763 = vpop.permute.xlu0 %762
      %764 = vrot.lane.b32.xlu0 %v718, 8
      %v765 = vpop.permute.xlu0 %764
      %766 = vrot.lane.b32.xlu0 %v721, 8
      %v767 = vpop.permute.xlu0 %766
      %768 = vrot.lane.b32.xlu0 %v724, 8
      %v769 = vpop.permute.xlu0 %768
      %770 = vrot.lane.b32.xlu0 %v727, 8
      %v771 = vpop.permute.xlu0 %770
      %772 = vrot.lane.b32.xlu0 %v730, 8
      %v773 = vpop.permute.xlu0 %772
      %774 = vrot.lane.b32.xlu0 %v733, 8
      %v775 = vpop.permute.xlu0 %774
      %776 = vrot.lane.b32.xlu0 %v736, 8
      %v777 = vpop.permute.xlu0 %776
      %778 = vrot.lane.b32.xlu0 %v739, 8
      %v779 = vpop.permute.xlu0 %778
      %780 = vrot.lane.b32.xlu0 %v742, 8
      %v781 = vpop.permute.xlu0 %780
      %782 = vrot.lane.b32.xlu0 %v745, 8
      %v783 = vpop.permute.xlu0 %782
      %784 = vrot.lane.b32.xlu0 %v748, 8
      %v785 = vpop.permute.xlu0 %784
      %786 = vrot.lane.b32.xlu0 %v751, 8
      %v787 = vpop.permute.xlu0 %786
      %vm788 = vcmask 31744
      %v790 = vsel %vm788, %v372, %v662
      %v792 = vsel %vm788, %v373, %v664
      %v794 = vsel %vm788, %v374, %v666
      %v796 = vsel %vm788, %v375, %v668
      %v798 = vsel %vm788, %v376, %v670
      %v800 = vsel %vm788, %v377, %v672
      %v802 = vsel %vm788, %v378, %v674
      %v804 = vsel %vm788, %v379, %v676
      %v806 = vsel %vm788, %v380, %v678
      %v808 = vsel %vm788, %v381, %v680
      %v810 = vsel %vm788, %v382, %v682
      %v812 = vsel %vm788, %v383, %v684
      %v814 = vsel %vm788, %v384, %v686
      %v816 = vsel %vm788, %v385, %v688
      %v818 = vsel %vm788, %v386, %v690
      %v820 = vsel %vm788, %v387, %v692
      %v822 = vsel %vm788, %v388, %v694
      %v824 = vsel %vm788, %v389, %v696
      %vm825 = vcmask 64512
      %v827 = vsel %vm825, %v790, %v753
      %v829 = vsel %vm825, %v792, %v755
      %v831 = vsel %vm825, %v794, %v757
      %v833 = vsel %vm825, %v796, %v759
      %v835 = vsel %vm825, %v798, %v761
      %v837 = vsel %vm825, %v800, %v763
      %v839 = vsel %vm825, %v802, %v765
      %v841 = vsel %vm825, %v804, %v767
      %v843 = vsel %vm825, %v806, %v769
      %v845 = vsel %vm825, %v808, %v771
      %v847 = vsel %vm825, %v810, %v773
      %v849 = vsel %vm825, %v812, %v775
      %v851 = vsel %vm825, %v814, %v777
      %v853 = vsel %vm825, %v816, %v779
      %v855 = vsel %vm825, %v818, %v781
      %v857 = vsel %vm825, %v820, %v783
      %v859 = vsel %vm825, %v822, %v785
      %v861 = vsel %vm825, %v824, %v787
      %878 = vrot.lane.b32.xlu0 %v829, 12
      %v879 = vpop.permute.xlu0 %878
      %880 = vrot.lane.b32.xlu0 %v831, 12
      %v881 = vpop.permute.xlu0 %880
      %882 = vrot.lane.b32.xlu0 %v833, 12
      %v883 = vpop.permute.xlu0 %882
      %884 = vrot.lane.b32.xlu0 %v835, 12
      %v885 = vpop.permute.xlu0 %884
      %886 = vrot.lane.b32.xlu0 %v837, 12
      %v887 = vpop.permute.xlu0 %886
      %888 = vrot.lane.b32.xlu0 %v839, 12
      %v889 = vpop.permute.xlu0 %888
      %890 = vrot.lane.b32.xlu0 %v841, 12
      %v891 = vpop.permute.xlu0 %890
      %892 = vrot.lane.b32.xlu0 %v843, 12
      %v893 = vpop.permute.xlu0 %892
      %894 = vrot.lane.b32.xlu0 %v845, 12
      %v895 = vpop.permute.xlu0 %894
      %896 = vrot.lane.b32.xlu0 %v847, 12
      %v897 = vpop.permute.xlu0 %896
      %898 = vrot.lane.b32.xlu0 %v849, 12
      %v899 = vpop.permute.xlu0 %898
      %900 = vrot.lane.b32.xlu0 %v851, 12
      %v901 = vpop.permute.xlu0 %900
      %902 = vrot.lane.b32.xlu0 %v853, 12
      %v903 = vpop.permute.xlu0 %902
      %904 = vrot.lane.b32.xlu0 %v855, 12
      %v905 = vpop.permute.xlu0 %904
      %906 = vrot.lane.b32.xlu0 %v857, 12
      %v907 = vpop.permute.xlu0 %906
      %908 = vrot.lane.b32.xlu0 %v859, 12
      %v909 = vpop.permute.xlu0 %908
      %911 = vrot.lane.b32.xlu0 %v831, 24
      %v912 = vpop.permute.xlu0 %911
      %913 = vrot.lane.b32.xlu0 %v833, 24
      %v914 = vpop.permute.xlu0 %913
      %915 = vrot.lane.b32.xlu0 %v835, 24
      %v916 = vpop.permute.xlu0 %915
      %917 = vrot.lane.b32.xlu0 %v837, 24
      %v918 = vpop.permute.xlu0 %917
      %919 = vrot.lane.b32.xlu0 %v839, 24
      %v920 = vpop.permute.xlu0 %919
      %921 = vrot.lane.b32.xlu0 %v841, 24
      %v922 = vpop.permute.xlu0 %921
      %923 = vrot.lane.b32.xlu0 %v843, 24
      %v924 = vpop.permute.xlu0 %923
      %925 = vrot.lane.b32.xlu0 %v845, 24
      %v926 = vpop.permute.xlu0 %925
      %927 = vrot.lane.b32.xlu0 %v847, 24
      %v928 = vpop.permute.xlu0 %927
      %929 = vrot.lane.b32.xlu0 %v849, 24
      %v930 = vpop.permute.xlu0 %929
      %931 = vrot.lane.b32.xlu0 %v851, 24
      %v932 = vpop.permute.xlu0 %931
      %933 = vrot.lane.b32.xlu0 %v853, 24
      %v934 = vpop.permute.xlu0 %933
      %935 = vrot.lane.b32.xlu0 %v855, 24
      %v936 = vpop.permute.xlu0 %935
      %937 = vrot.lane.b32.xlu0 %v857, 24
      %v938 = vpop.permute.xlu0 %937
      %939 = vrot.lane.b32.xlu0 %v859, 24
      %v940 = vpop.permute.xlu0 %939
      %941 = vrot.lane.b32.xlu0 %v861, 24
      %v942 = vpop.permute.xlu0 %941
      %vm943 = vcmask 97280
      %v945 = vsel %vm943, %v827, %v879
      %v947 = vsel %vm943, %v829, %v881
      %v949 = vsel %vm943, %v831, %v883
      %v951 = vsel %vm943, %v833, %v885
      %v953 = vsel %vm943, %v835, %v887
      %v955 = vsel %vm943, %v837, %v889
      %v957 = vsel %vm943, %v839, %v891
      %v959 = vsel %vm943, %v841, %v893
      %v961 = vsel %vm943, %v843, %v895
      %v963 = vsel %vm943, %v845, %v897
      %v965 = vsel %vm943, %v847, %v899
      %v967 = vsel %vm943, %v849, %v901
      %v969 = vsel %vm943, %v851, %v903
      %v971 = vsel %vm943, %v853, %v905
      %v973 = vsel %vm943, %v855, %v907
      %v975 = vsel %vm943, %v857, %v909
      %vm976 = vcmask 195584
      %v978 = vsel %vm976, %v945, %v912
      %v980 = vsel %vm976, %v947, %v914
      %v982 = vsel %vm976, %v949, %v916
      %v984 = vsel %vm976, %v951, %v918
      %v986 = vsel %vm976, %v953, %v920
      %v988 = vsel %vm976, %v955, %v922
      %v990 = vsel %vm976, %v957, %v924
      %v992 = vsel %vm976, %v959, %v926
      %v994 = vsel %vm976, %v961, %v928
      %v996 = vsel %vm976, %v963, %v930
      %v998 = vsel %vm976, %v965, %v932
      %v1000 = vsel %vm976, %v967, %v934
      %v1002 = vsel %vm976, %v969, %v936
      %v1004 = vsel %vm976, %v971, %v938
      %v1006 = vsel %vm976, %v973, %v940
      %v1008 = vsel %vm976, %v975, %v942
      %v1009 = vld [vmem:[%s1] sm:$0xf]
      %v1010 = vld [vmem:[%s1 + $0x4] sm:$0xf]
      %v1011 = vld [vmem:[%s1 + $0x8] sm:$0xf]
      %v1012 = vld [vmem:[%s1 + $0xc] sm:$0xf]
      %v1013 = vld [vmem:[%s1 + $0x10] sm:$0x3]
      %v1019 = vunpack.c.l.b16 %v1009
      %v1020 = vunpack.c.l.b16 %v1010
      %v1021 = vunpack.c.l.b16 %v1011
      %v1022 = vunpack.c.l.b16 %v1012
      %v1023 = vunpack.c.l.b16 %v1013
      %v1024 = vpack.c.b16 %v1020, %v1019
      %v1025 = vpack.c.b16 %v1022, %v1021
      %v1026 = vpack.c.b16 %v1023, %v1023
      %vm1029 = vcmask 293888
      %v1030 = vsel %vm1029, %v978, 0
      %v1032 = vsel %vm1029, %v980, 0
      %v1034 = vsel %vm1029, %v982, 0
      %v1036 = vsel %vm1029, %v984, 0
      %v1038 = vsel %vm1029, %v986, 0
      %v1040 = vsel %vm1029, %v988, 0
      %v1042 = vsel %vm1029, %v990, 0
      %v1044 = vsel %vm1029, %v992, 0
      %v1046 = vsel %vm1029, %v994, 0
      %v1048 = vsel %vm1029, %v996, 0
      %v1050 = vsel %vm1029, %v998, 0
      %v1052 = vsel %vm1029, %v1000, 0
      %v1054 = vsel %vm1029, %v1002, 0
      %v1056 = vsel %vm1029, %v1004, 0
      %v1058 = vsel %vm1029, %v1006, 0
      %v1060 = vsel %vm1029, %v1008, 0
      %vm1062 = vcmask 1041408
      %v1064 = vsel %vm1062, %v1026, 0
      %1066 = vmatpush.bf16.msra.mxu0 0
      %1067 = vmatpush.bf16.msra.mxu0 0
      %1068 = vmatpush.bf16.msra.mxu0 0
      %1069 = vmatpush.bf16.msra.mxu0 0
      %1070 = vmatpush.bf16.msra.mxu0 0
      %1071 = vmatpush.bf16.msra.mxu0 %v1064
      %1072 = vmatpush.bf16.msra.mxu0 %v1025
      %1073 = vmatpush.bf16.msra.mxu0 %v1024
      %1074 = vmatmul.bf16.gmra.mxu0 %v1030
      %v1075 = vpop.f32.mrf.mxu0
      %v1076 = vadd.f32 0.0, %v1075
      %v1077 = vpop.f32.mrf.mxu0
      %v1078 = vadd.f32 0.0, %v1077
      %1079 = vmatmul.bf16.gmra.mxu0 %v1032
      %v1080 = vpop.f32.mrf.mxu0
      %v1081 = vadd.f32 0.0, %v1080
      %v1082 = vpop.f32.mrf.mxu0
      %v1083 = vadd.f32 0.0, %v1082
      %1084 = vmatmul.bf16.gmra.mxu0 %v1034
      %v1085 = vpop.f32.mrf.mxu0
      %v1086 = vadd.f32 0.0, %v1085
      %v1087 = vpop.f32.mrf.mxu0
      %v1088 = vadd.f32 0.0, %v1087
      %1089 = vmatmul.bf16.gmra.mxu0 %v1036
      %v1090 = vpop.f32.mrf.mxu0
      %v1091 = vadd.f32 0.0, %v1090
      %v1092 = vpop.f32.mrf.mxu0
      %v1093 = vadd.f32 0.0, %v1092
      %1094 = vmatmul.bf16.gmra.mxu0 %v1038
      %v1095 = vpop.f32.mrf.mxu0
      %v1096 = vadd.f32 0.0, %v1095
      %v1097 = vpop.f32.mrf.mxu0
      %v1098 = vadd.f32 0.0, %v1097
      %1099 = vmatmul.bf16.gmra.mxu0 %v1040
      %v1100 = vpop.f32.mrf.mxu0
      %v1101 = vadd.f32 0.0, %v1100
      %v1102 = vpop.f32.mrf.mxu0
      %v1103 = vadd.f32 0.0, %v1102
      %1104 = vmatmul.bf16.gmra.mxu0 %v1042
      %v1105 = vpop.f32.mrf.mxu0
      %v1106 = vadd.f32 0.0, %v1105
      %v1107 = vpop.f32.mrf.mxu0
      %v1108 = vadd.f32 0.0, %v1107
      %1109 = vmatmul.bf16.gmra.mxu0 %v1044
      %v1110 = vpop.f32.mrf.mxu0
      %v1111 = vadd.f32 0.0, %v1110
      %v1112 = vpop.f32.mrf.mxu0
      %v1113 = vadd.f32 0.0, %v1112
      %1114 = vmatmul.bf16.gmra.mxu0 %v1046
      %v1115 = vpop.f32.mrf.mxu0
      %v1116 = vadd.f32 0.0, %v1115
      %v1117 = vpop.f32.mrf.mxu0
      %v1118 = vadd.f32 0.0, %v1117
      %1119 = vmatmul.bf16.gmra.mxu0 %v1048
      %v1120 = vpop.f32.mrf.mxu0
      %v1121 = vadd.f32 0.0, %v1120
      %v1122 = vpop.f32.mrf.mxu0
      %v1123 = vadd.f32 0.0, %v1122
      %1124 = vmatmul.bf16.gmra.mxu0 %v1050
      %v1125 = vpop.f32.mrf.mxu0
      %v1126 = vadd.f32 0.0, %v1125
      %v1127 = vpop.f32.mrf.mxu0
      %v1128 = vadd.f32 0.0, %v1127
      %1129 = vmatmul.bf16.gmra.mxu0 %v1052
      %v1130 = vpop.f32.mrf.mxu0
      %v1131 = vadd.f32 0.0, %v1130
      %v1132 = vpop.f32.mrf.mxu0
      %v1133 = vadd.f32 0.0, %v1132
      %1134 = vmatmul.bf16.gmra.mxu0 %v1054
      %v1135 = vpop.f32.mrf.mxu0
      %v1136 = vadd.f32 0.0, %v1135
      %v1137 = vpop.f32.mrf.mxu0
      %v1138 = vadd.f32 0.0, %v1137
      %1139 = vmatmul.bf16.gmra.mxu0 %v1056
      %v1140 = vpop.f32.mrf.mxu0
      %v1141 = vadd.f32 0.0, %v1140
      %v1142 = vpop.f32.mrf.mxu0
      %v1143 = vadd.f32 0.0, %v1142
      %1144 = vmatmul.bf16.gmra.mxu0 %v1058
      %v1145 = vpop.f32.mrf.mxu0
      %v1146 = vadd.f32 0.0, %v1145
      %v1147 = vpop.f32.mrf.mxu0
      %v1148 = vadd.f32 0.0, %v1147
      %1149 = vmatmul.bf16.gmra.mxu0 %v1060
      %v1150 = vpop.f32.mrf.mxu0
      %v1151 = vadd.f32 0.0, %v1150
      %v1152 = vpop.f32.mrf.mxu0
      %v1153 = vadd.f32 0.0, %v1152
      %1154 = vdwg.mxu0
      %v1155 = vpack.c.bf16 %v1076, %v1076
      %v1156 = vpack.c.bf16 %v1078, %v1078
      %v1157 = vpack.c.bf16 %v1081, %v1081
      %v1158 = vpack.c.bf16 %v1083, %v1083
      %v1159 = vpack.c.bf16 %v1086, %v1086
      %v1160 = vpack.c.bf16 %v1088, %v1088
      %v1161 = vpack.c.bf16 %v1091, %v1091
      %v1162 = vpack.c.bf16 %v1093, %v1093
      %v1163 = vpack.c.bf16 %v1096, %v1096
      %v1164 = vpack.c.bf16 %v1098, %v1098
      %v1165 = vpack.c.bf16 %v1101, %v1101
      %v1166 = vpack.c.bf16 %v1103, %v1103
      %v1167 = vpack.c.bf16 %v1106, %v1106
      %v1168 = vpack.c.bf16 %v1108, %v1108
      %v1169 = vpack.c.bf16 %v1111, %v1111
      %v1170 = vpack.c.bf16 %v1113, %v1113
      %v1171 = vpack.c.bf16 %v1116, %v1116
      %v1172 = vpack.c.bf16 %v1118, %v1118
      %v1173 = vpack.c.bf16 %v1121, %v1121
      %v1174 = vpack.c.bf16 %v1123, %v1123
      %v1175 = vpack.c.bf16 %v1126, %v1126
      %v1176 = vpack.c.bf16 %v1128, %v1128
      %v1177 = vpack.c.bf16 %v1131, %v1131
      %v1178 = vpack.c.bf16 %v1133, %v1133
      %v1179 = vpack.c.bf16 %v1136, %v1136
      %v1180 = vpack.c.bf16 %v1138, %v1138
      %v1181 = vpack.c.bf16 %v1141, %v1141
      %v1182 = vpack.c.bf16 %v1143, %v1143
      %v1183 = vpack.c.bf16 %v1146, %v1146
      %v1184 = vpack.c.bf16 %v1148, %v1148
      %v1185 = vpack.c.bf16 %v1151, %v1151
      %v1186 = vpack.c.bf16 %v1153, %v1153
      %vm1187 = vcmask 257024
      %1188 = vst.msk [vmem:[%s237] sm:$0xf] %vm1187, %v1155
      %1189 = vst.msk [vmem:[%s237 + $0x4] sm:$0xf] %vm1187, %v1156
      %1190 = vst.msk [vmem:[%s237 + $0x8] sm:$0xf] %vm1187, %v1157
      %1191 = vst.msk [vmem:[%s237 + $0xc] sm:$0xf] %vm1187, %v1158
      %1192 = vst.msk [vmem:[%s237 + $0x10] sm:$0xf] %vm1187, %v1159
      %1193 = vst.msk [vmem:[%s237 + $0x14] sm:$0xf] %vm1187, %v1160
      %1194 = vst.msk [vmem:[%s237 + $0x18] sm:$0xf] %vm1187, %v1161
      %1195 = vst.msk [vmem:[%s237 + $0x1c] sm:$0xf] %vm1187, %v1162
      %1196 = vst.msk [vmem:[%s237 + $0x20] sm:$0xf] %vm1187, %v1163
      %1197 = vst.msk [vmem:[%s237 + $0x24] sm:$0xf] %vm1187, %v1164
      %1198 = vst.msk [vmem:[%s237 + $0x28] sm:$0xf] %vm1187, %v1165
      %1199 = vst.msk [vmem:[%s237 + $0x2c] sm:$0xf] %vm1187, %v1166
      %1200 = vst.msk [vmem:[%s237 + $0x30] sm:$0xf] %vm1187, %v1167
      %1201 = vst.msk [vmem:[%s237 + $0x34] sm:$0xf] %vm1187, %v1168
      %1202 = vst.msk [vmem:[%s237 + $0x38] sm:$0xf] %vm1187, %v1169
      %1203 = vst.msk [vmem:[%s237 + $0x3c] sm:$0xf] %vm1187, %v1170
      %1204 = vst.msk [vmem:[%s237 + $0x40] sm:$0xf] %vm1187, %v1171
      %1205 = vst.msk [vmem:[%s237 + $0x44] sm:$0xf] %vm1187, %v1172
      %1206 = vst.msk [vmem:[%s237 + $0x48] sm:$0xf] %vm1187, %v1173
      %1207 = vst.msk [vmem:[%s237 + $0x4c] sm:$0xf] %vm1187, %v1174
      %1208 = vst.msk [vmem:[%s237 + $0x50] sm:$0xf] %vm1187, %v1175
      %1209 = vst.msk [vmem:[%s237 + $0x54] sm:$0xf] %vm1187, %v1176
      %1210 = vst.msk [vmem:[%s237 + $0x58] sm:$0xf] %vm1187, %v1177
      %1211 = vst.msk [vmem:[%s237 + $0x5c] sm:$0xf] %vm1187, %v1178
      %1212 = vst.msk [vmem:[%s237 + $0x60] sm:$0xf] %vm1187, %v1179
      %1213 = vst.msk [vmem:[%s237 + $0x64] sm:$0xf] %vm1187, %v1180
      %1214 = vst.msk [vmem:[%s237 + $0x68] sm:$0xf] %vm1187, %v1181
      %1215 = vst.msk [vmem:[%s237 + $0x6c] sm:$0xf] %vm1187, %v1182
      %1216 = vst.msk [vmem:[%s237 + $0x70] sm:$0xf] %vm1187, %v1183
      %1217 = vst.msk [vmem:[%s237 + $0x74] sm:$0xf] %vm1187, %v1184
      %1218 = vst.msk [vmem:[%s237 + $0x78] sm:$0xf] %vm1187, %v1185
      %1219 = vst.msk [vmem:[%s237 + $0x7c] sm:$0xf] %vm1187, %v1186
      %p1220 = scmp.eq.s32.totalorder %s21, 0
      // Predicated region
      $region29: #{up_conv_forward.2} parent=27 // pred_check
        %p1221 = pneg %p1220
      $region30: #{up_conv_forward.2} parent=27 // pred_check_branch
        %1223 = sbr.rel (%p1221) target = $region32
      $region31: #{up_conv_forward.2} parent=27 // pred_region
        %vm1224 = vcmask 253952
        %1225 = vst.msk [vmem:[%s241] sm:$0x1] %vm1224, 0.0
        %1226 = vst.msk [vmem:[%s244] sm:$0x1] %vm1224, 0.0
      $region32: #{up_conv_forward.2} parent=27 // pred_fallthru
        _
      %v1227 = vld [vmem:[%s241] sm:$0x1]
      %vm1228 = vcmask 261120
      %v1229 = vsel %vm1228, %v1076, 0.0
      %v1230 = vsel %vm1228, %v1078, 0.0
      %v1231 = vadd.f32 %v1229, %v1230
      %v1232 = vsel %vm1228, %v1081, 0.0
      %v1233 = vadd.f32 %v1231, %v1232
      %v1234 = vsel %vm1228, %v1083, 0.0
      %v1235 = vadd.f32 %v1233, %v1234
      %v1236 = vsel %vm1228, %v1086, 0.0
      %v1237 = vadd.f32 %v1235, %v1236
      %v1238 = vsel %vm1228, %v1088, 0.0
      %v1239 = vadd.f32 %v1237, %v1238
      %v1240 = vsel %vm1228, %v1091, 0.0
      %v1241 = vadd.f32 %v1239, %v1240
      %v1242 = vsel %vm1228, %v1093, 0.0
      %v1243 = vadd.f32 %v1241, %v1242
      %v1244 = vsel %vm1228, %v1096, 0.0
      %v1245 = vadd.f32 %v1243, %v1244
      %v1246 = vsel %vm1228, %v1098, 0.0
      %v1247 = vadd.f32 %v1245, %v1246
      %v1248 = vsel %vm1228, %v1101, 0.0
      %v1249 = vadd.f32 %v1247, %v1248
      %v1250 = vsel %vm1228, %v1103, 0.0
      %v1251 = vadd.f32 %v1249, %v1250
      %v1252 = vsel %vm1228, %v1106, 0.0
      %v1253 = vadd.f32 %v1251, %v1252
      %v1254 = vsel %vm1228, %v1108, 0.0
      %v1255 = vadd.f32 %v1253, %v1254
      %v1256 = vsel %vm1228, %v1111, 0.0
      %v1257 = vadd.f32 %v1255, %v1256
      %v1258 = vsel %vm1228, %v1113, 0.0
      %v1259 = vadd.f32 %v1257, %v1258
      %v1260 = vsel %vm1228, %v1116, 0.0
      %v1261 = vadd.f32 %v1259, %v1260
      %v1262 = vsel %vm1228, %v1118, 0.0
      %v1263 = vadd.f32 %v1261, %v1262
      %v1264 = vsel %vm1228, %v1121, 0.0
      %v1265 = vadd.f32 %v1263, %v1264
      %v1266 = vsel %vm1228, %v1123, 0.0
      %v1267 = vadd.f32 %v1265, %v1266
      %v1268 = vsel %vm1228, %v1126, 0.0
      %v1269 = vadd.f32 %v1267, %v1268
      %v1270 = vsel %vm1228, %v1128, 0.0
      %v1271 = vadd.f32 %v1269, %v1270
      %v1272 = vsel %vm1228, %v1131, 0.0
      %v1273 = vadd.f32 %v1271, %v1272
      %v1274 = vsel %vm1228, %v1133, 0.0
      %v1275 = vadd.f32 %v1273, %v1274
      %v1276 = vsel %vm1228, %v1136, 0.0
      %v1277 = vadd.f32 %v1275, %v1276
      %v1278 = vsel %vm1228, %v1138, 0.0
      %v1279 = vadd.f32 %v1277, %v1278
      %v1280 = vsel %vm1228, %v1141, 0.0
      %v1281 = vadd.f32 %v1279, %v1280
      %v1282 = vsel %vm1228, %v1143, 0.0
      %v1283 = vadd.f32 %v1281, %v1282
      %v1284 = vsel %vm1228, %v1146, 0.0
      %v1285 = vadd.f32 %v1283, %v1284
      %v1286 = vsel %vm1228, %v1148, 0.0
      %v1287 = vadd.f32 %v1285, %v1286
      %v1288 = vsel %vm1228, %v1151, 0.0
      %v1289 = vadd.f32 %v1287, %v1288
      %v1290 = vsel %vm1228, %v1153, 0.0
      %v1291 = vadd.f32 %v1289, %v1290
      %v1292 = vrot.slane %v1291, 4
      %v1293 = vadd.f32 %v1291, %v1292
      %v1294 = vrot.slane %v1293, 2
      %v1295 = vadd.f32 %v1293, %v1294
      %v1296 = vrot.slane %v1295, 1
      %v1297 = vadd.f32 %v1295, %v1296
      %v1298 = vadd.f32 %v1227, %v1297
      %vm1299 = vcmask 253952
      %1300 = vst.msk [vmem:[%s241] sm:$0x1] %vm1299, %v1298
      %v1301 = vld [vmem:[%s244] sm:$0x1]
      %v1302 = vmul.f32 %v1076, %v1076
      %v1303 = vmul.f32 %v1078, %v1078
      %v1304 = vmul.f32 %v1081, %v1081
      %v1305 = vmul.f32 %v1083, %v1083
      %v1306 = vmul.f32 %v1086, %v1086
      %v1307 = vmul.f32 %v1088, %v1088
      %v1308 = vmul.f32 %v1091, %v1091
      %v1309 = vmul.f32 %v1093, %v1093
      %v1310 = vmul.f32 %v1096, %v1096
      %v1311 = vmul.f32 %v1098, %v1098
      %v1312 = vmul.f32 %v1101, %v1101
      %v1313 = vmul.f32 %v1103, %v1103
      %v1314 = vmul.f32 %v1106, %v1106
      %v1315 = vmul.f32 %v1108, %v1108
      %v1316 = vmul.f32 %v1111, %v1111
      %v1317 = vmul.f32 %v1113, %v1113
      %v1318 = vmul.f32 %v1116, %v1116
      %v1319 = vmul.f32 %v1118, %v1118
      %v1320 = vmul.f32 %v1121, %v1121
      %v1321 = vmul.f32 %v1123, %v1123
      %v1322 = vmul.f32 %v1126, %v1126
      %v1323 = vmul.f32 %v1128, %v1128
      %v1324 = vmul.f32 %v1131, %v1131
      %v1325 = vmul.f32 %v1133, %v1133
      %v1326 = vmul.f32 %v1136, %v1136
      %v1327 = vmul.f32 %v1138, %v1138
      %v1328 = vmul.f32 %v1141, %v1141
      %v1329 = vmul.f32 %v1143, %v1143
      %v1330 = vmul.f32 %v1146, %v1146
      %v1331 = vmul.f32 %v1148, %v1148
      %v1332 = vmul.f32 %v1151, %v1151
      %v1333 = vmul.f32 %v1153, %v1153
      %v1334 = vsel %vm1228, %v1302, 0.0
      %v1335 = vsel %vm1228, %v1303, 0.0
      %v1336 = vadd.f32 %v1334, %v1335
      %v1337 = vsel %vm1228, %v1304, 0.0
      %v1338 = vadd.f32 %v1336, %v1337
      %v1339 = vsel %vm1228, %v1305, 0.0
      %v1340 = vadd.f32 %v1338, %v1339
      %v1341 = vsel %vm1228, %v1306, 0.0
      %v1342 = vadd.f32 %v1340, %v1341
      %v1343 = vsel %vm1228, %v1307, 0.0
      %v1344 = vadd.f32 %v1342, %v1343
      %v1345 = vsel %vm1228, %v1308, 0.0
      %v1346 = vadd.f32 %v1344, %v1345
      %v1347 = vsel %vm1228, %v1309, 0.0
      %v1348 = vadd.f32 %v1346, %v1347
      %v1349 = vsel %vm1228, %v1310, 0.0
      %v1350 = vadd.f32 %v1348, %v1349
      %v1351 = vsel %vm1228, %v1311, 0.0
      %v1352 = vadd.f32 %v1350, %v1351
      %v1353 = vsel %vm1228, %v1312, 0.0
      %v1354 = vadd.f32 %v1352, %v1353
      %v1355 = vsel %vm1228, %v1313, 0.0
      %v1356 = vadd.f32 %v1354, %v1355
      %v1357 = vsel %vm1228, %v1314, 0.0
      %v1358 = vadd.f32 %v1356, %v1357
      %v1359 = vsel %vm1228, %v1315, 0.0
      %v1360 = vadd.f32 %v1358, %v1359
      %v1361 = vsel %vm1228, %v1316, 0.0
      %v1362 = vadd.f32 %v1360, %v1361
      %v1363 = vsel %vm1228, %v1317, 0.0
      %v1364 = vadd.f32 %v1362, %v1363
      %v1365 = vsel %vm1228, %v1318, 0.0
      %v1366 = vadd.f32 %v1364, %v1365
      %v1367 = vsel %vm1228, %v1319, 0.0
      %v1368 = vadd.f32 %v1366, %v1367
      %v1369 = vsel %vm1228, %v1320, 0.0
      %v1370 = vadd.f32 %v1368, %v1369
      %v1371 = vsel %vm1228, %v1321, 0.0
      %v1372 = vadd.f32 %v1370, %v1371
      %v1373 = vsel %vm1228, %v1322, 0.0
      %v1374 = vadd.f32 %v1372, %v1373
      %v1375 = vsel %vm1228, %v1323, 0.0
      %v1376 = vadd.f32 %v1374, %v1375
      %v1377 = vsel %vm1228, %v1324, 0.0
      %v1378 = vadd.f32 %v1376, %v1377
      %v1379 = vsel %vm1228, %v1325, 0.0
      %v1380 = vadd.f32 %v1378, %v1379
      %v1381 = vsel %vm1228, %v1326, 0.0
      %v1382 = vadd.f32 %v1380, %v1381
      %v1383 = vsel %vm1228, %v1327, 0.0
      %v1384 = vadd.f32 %v1382, %v1383
      %v1385 = vsel %vm1228, %v1328, 0.0
      %v1386 = vadd.f32 %v1384, %v1385
      %v1387 = vsel %vm1228, %v1329, 0.0
      %v1388 = vadd.f32 %v1386, %v1387
      %v1389 = vsel %vm1228, %v1330, 0.0
      %v1390 = vadd.f32 %v1388, %v1389
      %v1391 = vsel %vm1228, %v1331, 0.0
      %v1392 = vadd.f32 %v1390, %v1391
      %v1393 = vsel %vm1228, %v1332, 0.0
      %v1394 = vadd.f32 %v1392, %v1393
      %v1395 = vsel %vm1228, %v1333, 0.0
      %v1396 = vadd.f32 %v1394, %v1395
      %v1397 = vrot.slane %v1396, 4
      %v1398 = vadd.f32 %v1396, %v1397
      %v1399 = vrot.slane %v1398, 2
      %v1400 = vadd.f32 %v1398, %v1399
      %v1401 = vrot.slane %v1400, 1
      %v1402 = vadd.f32 %v1400, %v1401
      %v1403 = vadd.f32 %v1301, %v1402
      %1404 = vst.msk [vmem:[%s244] sm:$0x1] %vm1299, %v1403
      %s1405 = smul.u32 32, %s21
      %p1406 = scmp.lt.s32.totalorder %s20, 1
      %s1407 = scalar_select %p1406, %s20, 1
      %p1408 = scmp.lt.s32.totalorder %s1405, 31
      %s1409 = scalar_select %p1408, %s1405, 31
      %s1410 = smul.addr %s1407, 32
      %s1411 = sadd.s32 %s1409, %s1410
      %s1412 = smul.addr %s1411, 4
      %s1413 = scalar_lea.vmem %s2, %s1412
      %p1414 = scmp.lt.s32.totalorder %s20, 1
      %s1415 = scalar_select %p1414, %s20, 1
      %s1416 = scalar_lea.vmem %s3, %s1415
      %p1417 = scmp.lt.s32.totalorder %s20, 1
      %s1418 = scalar_select %p1417, %s20, 1
      %s1419 = scalar_lea.vmem %s4, %s1418
      // Predicated region
      $region33: #{up_conv_forward.2} parent=27 // pred_check
        %p1420 = pneg %p97
      $region34: #{up_conv_forward.2} parent=27 // pred_check_branch
        %1422 = sbr.rel (%p1420) target = $region36
      $region35: #{up_conv_forward.2} parent=27 // pred_region
        %s1423 = smul.u32 32, %s21
      $region36: #{up_conv_forward.2} parent=27 // pred_fallthru
        _
      // Predicated region
      $region37: #{up_conv_forward.2} parent=27 // pred_check
        %p1424 = pneg %p123
      $region38: #{up_conv_forward.2} parent=27 // pred_check_branch
        %1426 = sbr.rel (%p1424) target = $region40
      $region39: #{up_conv_forward.2} parent=27 // pred_region
        _
      $region40: #{up_conv_forward.2} parent=27 // pred_fallthru
        _
      // Predicated region
      $region41: #{up_conv_forward.2} parent=27 // pred_check
        %p1427 = pneg %p149
      $region42: #{up_conv_forward.2} parent=27 // pred_check_branch
        %1429 = sbr.rel (%p1427) target = $region44
      $region43: #{up_conv_forward.2} parent=27 // pred_region
        _
      $region44: #{up_conv_forward.2} parent=27 // pred_fallthru
        _
    $region28: #{up_conv_forward.2} parent=5 // pred_fallthru
      _
    %p1430 = scmp.le.s32.totalorder 2, %s11
    // Predicated region
    $region45: #{up_conv_forward.2} parent=5 // pred_check
      %p1431 = pneg %p1430
    $region46: #{up_conv_forward.2} parent=5 // pred_check_branch
      %1433 = sbr.rel (%p1431) target = $region48
    $region47: #{up_conv_forward.2} parent=5 // pred_region
      %s1434 = ssub.s32 %s11, 2
      // Predicated region
      $region49: #{up_conv_forward.2} parent=47 // pred_check
        %p1435 = pneg %p103
      $region50: #{up_conv_forward.2} parent=47 // pred_check_branch
        %1437 = sbr.rel (%p1435) target = $region52
      $region51: #{up_conv_forward.2} parent=47 // pred_region
        %s1438 = smul.u32 32, %s23
        %p1439 = scmp.lt.s32.totalorder %s22, 1
        %s1440 = scalar_select %p1439, %s22, 1
        %p1441 = scmp.lt.s32.totalorder %s1438, 31
        %s1442 = scalar_select %p1441, %s1438, 31
        %s1443 = smul.addr %s1440, 32
        %s1444 = sadd.s32 %s1442, %s1443
        %s1445 = smul.addr %s1444, 4
        %s1446 = scalar_lea.vmem %s2, %s1445
      $region52: #{up_conv_forward.2} parent=47 // pred_fallthru
        _
      // Predicated region
      $region53: #{up_conv_forward.2} parent=47 // pred_check
        %p1447 = pneg %p129
      $region54: #{up_conv_forward.2} parent=47 // pred_check_branch
        %1449 = sbr.rel (%p1447) target = $region56
      $region55: #{up_conv_forward.2} parent=47 // pred_region
        %p1450 = scmp.lt.s32.totalorder %s22, 1
        %s1451 = scalar_select %p1450, %s22, 1
        %s1452 = scalar_lea.vmem %s3, %s1451
      $region56: #{up_conv_forward.2} parent=47 // pred_fallthru
        _
      // Predicated region
      $region57: #{up_conv_forward.2} parent=47 // pred_check
        %p1453 = pneg %p155
      $region58: #{up_conv_forward.2} parent=47 // pred_check_branch
        %1455 = sbr.rel (%p1453) target = $region60
      $region59: #{up_conv_forward.2} parent=47 // pred_region
        %p1456 = scmp.lt.s32.totalorder %s22, 1
        %s1457 = scalar_select %p1456, %s22, 1
        %s1458 = scalar_lea.vmem %s4, %s1457
      $region60: #{up_conv_forward.2} parent=47 // pred_fallthru
        _
    $region48: #{up_conv_forward.2} parent=5 // pred_fallthru
      _
  $region6: #{up_conv_forward.2} parent=0 // loop_footer
    %s15 = sadd.s32 1, %s11
  $region7: #{up_conv_forward.2} parent=0 // loop_footer_branch
    %10 = sbr.rel target = $region3
  $region8: #{up_conv_forward.2} parent=0 // loop_exit
    _

</llo_original>
